<compile_context>
chip_gen: v7x
topology: tpu7x:2x2x1
jax: 0.10.0
libtpu: 0.0.40
codegen_flags: <defaults>
</compile_context>

<pallas_src>
import numpy as np

import jax
import jax.numpy as jnp
from jax.experimental import pallas as pl
from jax.experimental.pallas import tpu as pltpu

LAMBDA = 6.37e-07          # constant from expjQz
_MiB = 1024 * 1024


# ---------------------------------------------------------------------------
# generation-aware budgets / block sizing
# ---------------------------------------------------------------------------
def _tpu_budgets():
    """(default_scoped_vmem_bytes, physical_vmem_bytes, mxu_dim)."""
    kind = ""
    try:
        kind = jax.devices()[0].device_kind.lower()
    except Exception:
        pass
    if "v6" in kind:
        ds, phys, mxu = 32 * _MiB, 128 * _MiB, 256
    elif "v5" in kind or "v4" in kind or "v3" in kind or "v2" in kind:
        ds, phys, mxu = 16 * _MiB, 128 * _MiB, 128
    else:  # v7x or unknown: most conservative VMEM assumption (64 MiB / core)
        ds, phys, mxu = 32 * _MiB, 64 * _MiB, 256
    try:  # prefer the runtime-reported capacity when available
        cap = getattr(pltpu.get_tpu_info(), "vmem_capacity_bytes", None)
        if cap:
            phys = min(phys, int(cap))
    except Exception:
        pass
    return ds, phys, mxu


def _pick_nb(N, M1p, target_rows):
    """Samples fused per grid step.  Nb*M1p is kept near target_rows (half the
    MXU dimension: the real embedding doubles the row count), the batch-kron
    is skipped when M1p is already MXU-sized, and steps = N//Nb stays
    >= min(4, N) so the H blocks / output writeback still pipeline."""
    if M1p >= target_rows:
        return 1
    min_steps = min(4, N)
    valid = [d for d in range(1, N + 1)
             if N % d == 0 and d * M1p <= target_rows and N // d >= min_steps]
    if not valid:
        return 1
    best = max(valid)
    # mild preference for an even step count (keeps both v7x TensorCores fed)
    even = [d for d in valid if (N // d) % 2 == 0]
    if even and 2 * max(even) >= best:
        best = max(even)
    return best


def _dft_matrix(M, dtype):
    """M-point DFT matrix exp(-2*pi*i*j*k/M) as (real, imag) planes."""
    k = jnp.arange(M)
    # reduce the index product mod M before the division for f32 accuracy
    ph = -2.0 * jnp.pi * ((jnp.outer(k, k) % M).astype(dtype)) / M
    return jnp.cos(ph), jnp.sin(ph)


def _reduced_phase(Q, z):
    """(z / LAMBDA) * Q reduced mod 2*pi, in float64 when Q/z are concrete."""
    try:
        q64 = np.asarray(jax.device_get(Q), dtype=np.float64)
        z64 = float(np.asarray(jax.device_get(z), dtype=np.float64))
        ph = np.mod((z64 / LAMBDA) * q64, 2.0 * np.pi)
        return jnp.asarray(ph, dtype=jnp.float32)
    except Exception:
        # TODO(synk): traced Q/z fall back to an f32 reduction, which loses
        # precision when |z / LAMBDA * Q| >> 2*pi.
        ph = (jnp.asarray(z, jnp.float32) / jnp.float32(LAMBDA)) * Q.astype(jnp.float32)
        return jnp.mod(ph, jnp.float32(2.0 * np.pi))


# ---------------------------------------------------------------------------
# kernel
# ---------------------------------------------------------------------------
def _make_kernel(Nb, M1p, M2, mat_dtype):
    """One grid step = Nb samples fused into a lane-dense (Nb*M1p, 2*M2) slab."""
    NbM1 = Nb * M1p
    f32 = jnp.float32

    def kernel(w_ref, b_ref, t_ref,          # (M1p, 2*M2) invariant planes
               l1f_ref, l1c_ref,             # (2*NbM1, 2*NbM1) row-DFT embeds
               r2f_ref, r2c_ref,             # (2*M2, 2*M2)     col-DFT embeds
               h_ref,                        # (NbM1, 2*M2)     batch block of H
               o_ref):                       # (NbM1, 2*M2)     output [re | im]

        def mm(a, b):
            # one real-embedded MXU matmul per complex stage, f32 accumulation
            return jnp.dot(a.astype(mat_dtype), b.astype(mat_dtype),
                           preferred_element_type=f32)

        def rep(x):   # broadcast an invariant (M1p, 2*M2) plane over Nb samples
            return jnp.tile(x, (Nb, 1)) if Nb > 1 else x

        h = h_ref[...]
        w = rep(w_ref[...])
        bg = rep(b_ref[...])
        tc = rep(t_ref[...])
        hr, hi = h[:, :M2], h[:, M2:]
        wr, wi = w[:, :M2], w[:, M2:]
        br, bi = bg[:, :M2], bg[:, M2:]
        tr, ti = tc[:, :M2], tc[:, M2:]

        # A = H * W - ifft2(B)            (ifft2(B) precomputed in the wrapper)
        ar = hr * wr - hi * wi - br
        ai = hr * wi + hi * wr - bi
        a_cat = jnp.concatenate([ar, ai], axis=1)              # (NbM1, 2*M2)

        # fft2(A): column DFT (real-embedded F2), then row DFT (block-diag F1)
        g_cat = mm(a_cat, r2f_ref[...])                        # (NbM1, 2*M2)
        g_stk = jnp.concatenate([g_cat[:, :M2], g_cat[:, M2:]], axis=0)
        f_stk = mm(l1f_ref[...], g_stk)                        # (2*NbM1, M2)

        # multiply by conj(T) / (M1*M2)    (phase + ifft norm precomputed)
        fr, fi = f_stk[:NbM1, :], f_stk[NbM1:, :]
        pr = fr * tr - fi * ti
        pi = fr * ti + fi * tr
        p_stk = jnp.concatenate([pr, pi], axis=0)               # (2*NbM1, M2)

        # unnormalized ifft2: conj row DFT, then conj column DFT
        u_stk = mm(l1c_ref[...], p_stk)                         # (2*NbM1, M2)
        u_cat = jnp.concatenate([u_stk[:NbM1, :], u_stk[NbM1:, :]], axis=1)
        o_ref[...] = mm(u_cat, r2c_ref[...])                    # (NbM1, 2*M2)

    return kernel


# ---------------------------------------------------------------------------
# wrapper
# ---------------------------------------------------------------------------
def asr_model_bg(H, Q, z, B, W, *, matmul_dtype=jnp.bfloat16):
    """H: (N, M1, M2, 2); Q: (M1, M2); z: scalar; B, W: (M1, M2, 2)."""
    N, M1, M2, _ = H.shape
    f32 = jnp.float32
    md = matmul_dtype

    default_scoped, phys_vmem, mxu = _tpu_budgets()
    vmem_cap = max(phys_vmem - 16 * _MiB, 32 * _MiB)   # ~48 MiB on v7x

    # (8,128) sublane rule: pad M1 (and the row DFT) up to a multiple of 8.
    M1p = -(-M1 // 8) * 8
    pad_rows = M1p - M1
    Nb = _pick_nb(N, M1p, mxu // 2)        # embedded rows 2*Nb*M1p ~ MXU dim
    NbM1 = Nb * M1p
    steps = N // Nb

    def pad_plane(x):
        return jnp.pad(x, ((0, pad_rows), (0, 0))) if pad_rows else x

    # ---- batch data: lane-concatenated (N*M1p, 2*M2) slab [Hr | Hi] ----
    Hf = H.astype(f32)
    if pad_rows:
        Hf = jnp.pad(Hf, ((0, 0), (0, pad_rows), (0, 0), (0, 0)))
    h_cat = jnp.concatenate([Hf[..., 0].reshape(N * M1p, M2),
                             Hf[..., 1].reshape(N * M1p, M2)], axis=1)

    # ---- batch-invariant precompute (hoisted out of the kernel) ----
    w_cat = jnp.concatenate([pad_plane(W[..., 0].astype(f32)),
                             pad_plane(W[..., 1].astype(f32))], axis=1)

    Bc = B[..., 0].astype(jnp.complex64) + 1j * B[..., 1].astype(jnp.complex64)
    bfc = jnp.fft.ifft2(Bc)
    b_cat = jnp.concatenate([pad_plane(jnp.real(bfc).astype(f32)),
                             pad_plane(jnp.imag(bfc).astype(f32))], axis=1)

    # conj(T) with the 1/(M1*M2) ifft normalization folded in.
    inv_mn = 1.0 / float(M1 * M2)
    phase = _reduced_phase(Q, z)
    t_cat = jnp.concatenate([pad_plane(jnp.cos(phase) * inv_mn),
                             pad_plane(-jnp.sin(phase) * inv_mn)], axis=1)

    # ---- real-embedded DFT matrices ----
    f1r, f1i = _dft_matrix(M1, f32)
    if pad_rows:
        f1r = jnp.pad(f1r, ((0, pad_rows), (0, pad_rows)))
        f1i = jnp.pad(f1i, ((0, pad_rows), (0, pad_rows)))
    if Nb > 1:                                       # block-diag I_Nb (x) F1
        eye = jnp.eye(Nb, dtype=f32)
        f1r, f1i = jnp.kron(eye, f1r), jnp.kron(eye, f1i)
    f2r, f2i = _dft_matrix(M2, f32)

    l1f = jnp.block([[f1r, -f1i], [f1i, f1r]]).astype(md)     # F1b @ .
    l1c = jnp.block([[f1r, f1i], [-f1i, f1r]]).astype(md)     # conj(F1b) @ .
    r2f = jnp.block([[f2r, f2i], [-f2i, f2r]]).astype(md)     # . @ F2
    r2c = jnp.block([[f2r, -f2i], [f2i, f2r]]).astype(md)     # . @ conj(F2)

    mat_bytes = jnp.dtype(md).itemsize

    def build_call(single_buffer_consts):
        def const_spec(shape):
            imap = lambda g: (0,) * len(shape)
            if single_buffer_consts:
                # constants are fetched once; don't pay 2x VMEM for them
                return pl.BlockSpec(shape, imap, pipeline_mode=pl.Buffered(1))
            return pl.BlockSpec(shape, imap)

        plane_spec = const_spec((M1p, 2 * M2))
        l_spec = const_spec((2 * NbM1, 2 * NbM1))
        r_spec = const_spec((2 * M2, 2 * M2))
        h_spec = pl.BlockSpec((NbM1, 2 * M2), lambda g: (g, 0))
        o_spec = pl.BlockSpec((NbM1, 2 * M2), lambda g: (g, 0))

        # ---- VMEM budgeting (generation aware) ----
        cbuf = 1 if single_buffer_consts else 2
        const_bytes = cbuf * (3 * M1p * 2 * M2 * 4
                              + 2 * (2 * NbM1) ** 2 * mat_bytes
                              + 2 * (2 * M2) ** 2 * mat_bytes)
        moving_bytes = 2 * 2 * NbM1 * 2 * M2 * 4     # H + out, double-buffered
        temp_bytes = 8 * NbM1 * 2 * M2 * 4           # live f32 intermediates
        est_vmem = const_bytes + moving_bytes + temp_bytes
        vmem_limit = None
        if est_vmem > default_scoped:                # only raise past the default
            vmem_limit = int(min(est_vmem * 5 // 4, vmem_cap))

        flops = steps * (16 * NbM1 * NbM1 * M2 + 16 * NbM1 * M2 * M2
                         + 30 * NbM1 * M2)
        bytes_acc = (2 * N * M1p * 2 * M2 * 4
                     + 3 * M1p * 2 * M2 * 4
                     + (2 * (2 * NbM1) ** 2 + 2 * (2 * M2) ** 2) * mat_bytes)

        return pl.pallas_call(
            _make_kernel(Nb, M1p, M2, md),
            out_shape=jax.ShapeDtypeStruct((N * M1p, 2 * M2), f32),
            grid_spec=pltpu.PrefetchScalarGridSpec(
                num_scalar_prefetch=0,
                grid=(steps,),
                in_specs=[plane_spec, plane_spec, plane_spec,
                          l_spec, l_spec, r_spec, r_spec, h_spec],
                out_specs=o_spec),
            compiler_params=pltpu.CompilerParams(
                dimension_semantics=("parallel",),
                vmem_limit_bytes=vmem_limit),
            cost_estimate=pl.CostEstimate(flops=int(flops), transcendentals=0,
                                          bytes_accessed=int(bytes_acc)),
        )

    args = (w_cat, b_cat, t_cat, l1f, l1c, r2f, r2c, h_cat)
    try:
        out_cat = build_call(True)(*args)
    except Exception:
        # runtime without single-buffer (pipeline_mode) support -> default buffering
        out_cat = build_call(False)(*args)

    out3 = out_cat.reshape(N, M1p, 2 * M2)
    return jnp.stack([out3[:, :M1, :M2], out3[:, :M1, M2:]], axis=-1)


if __name__ == "__main__":
    key = jax.random.PRNGKey(0)
    N, M1, M2 = 2, 16, 128
    kH, kQ, kB, kW = jax.random.split(key, 4)

    # Deterministic synthetic "parameters" (shapes implied by the module):
    H = jax.random.normal(kH, (N, M1, M2, 2), jnp.float32)   # input field
    Q = jax.random.uniform(kQ, (M1, M2), jnp.float32)        # Qxy frequency grid
    B = jax.random.normal(kB, (M1, M2, 2), jnp.float32)      # background term
    W = jax.random.normal(kW, (M1, M2, 2), jnp.float32)      # complex weights
    z = 0.5 * LAMBDA                                          # z/lambda * Q ~ O(1)

    # Pure-JAX reference for correctness.
    Hc = H[..., 0] + 1j * H[..., 1]
    Wc = W[..., 0] + 1j * W[..., 1]
    Bc = B[..., 0] + 1j * B[..., 1]
    Tc = jnp.exp(1j * (z / LAMBDA) * Q.astype(jnp.complex64))
    A = Hc * Wc - jnp.fft.ifft2(Bc)
    ref_c = jnp.fft.ifft2(jnp.fft.fft2(A, axes=(-2, -1)) * jnp.conj(Tc),
                          axes=(-2, -1))
    ref = jnp.stack([ref_c.real, ref_c.imag], axis=-1)

    # f32 matmul path: strict tolerance (matches the module's f32 semantics).
    out32 = jax.block_until_ready(asr_model_bg(H, Q, z, B, W,
                                               matmul_dtype=jnp.float32))
    assert out32.shape == (N, M1, M2, 2)
    err32 = float(jnp.max(jnp.abs(out32 - ref)))
    assert err32 < 5e-3, f"f32 path: max abs error too large: {err32}"

    # bf16 matmul path (default, MXU fast path): relative-L2 sanity tolerance.
    out16 = jax.block_until_ready(asr_model_bg(H, Q, z, B, W))
    assert out16.shape == (N, M1, M2, 2)
    rel16 = float(jnp.sqrt(jnp.sum((out16 - ref) ** 2) / jnp.sum(ref ** 2)))
    assert rel16 < 6e-2, f"bf16 path: relative L2 error too large: {rel16}"

    print("KERNEL_OK")
</pallas_src>

<mosaic_0001>
module attributes {stable_mosaic.version = 11 : i64} {
  func.func @kernel(%arg0: i32, %arg1: memref<16x256xf32, #tpu.memory_space<vmem>>, %arg2: memref<16x256xf32, #tpu.memory_space<vmem>>, %arg3: memref<16x256xf32, #tpu.memory_space<vmem>>, %arg4: memref<32x32xf32, #tpu.memory_space<vmem>>, %arg5: memref<32x32xf32, #tpu.memory_space<vmem>>, %arg6: memref<256x256xf32, #tpu.memory_space<vmem>>, %arg7: memref<256x256xf32, #tpu.memory_space<vmem>>, %arg8: memref<16x256xf32, #tpu.memory_space<vmem>>, %arg9: memref<16x256xf32, #tpu.memory_space<vmem>>) attributes {dimension_semantics = [#tpu.dimension_semantics<parallel>], iteration_bounds = array<i64: 2>, scalar_prefetch = 0 : i64, scratch_operands = 0 : i64, tpu.core_type = #tpu.core_type<tc>, window_params = [{pipeline_mode = #tpu.pipeline_mode<synchronous>, transform_indices = @transform_0, window_bounds = array<i64: 16, 256>}, {pipeline_mode = #tpu.pipeline_mode<synchronous>, transform_indices = @transform_1, window_bounds = array<i64: 16, 256>}, {pipeline_mode = #tpu.pipeline_mode<synchronous>, transform_indices = @transform_2, window_bounds = array<i64: 16, 256>}, {pipeline_mode = #tpu.pipeline_mode<synchronous>, transform_indices = @transform_3, window_bounds = array<i64: 32, 32>}, {pipeline_mode = #tpu.pipeline_mode<synchronous>, transform_indices = @transform_4, window_bounds = array<i64: 32, 32>}, {pipeline_mode = #tpu.pipeline_mode<synchronous>, transform_indices = @transform_5, window_bounds = array<i64: 256, 256>}, {pipeline_mode = #tpu.pipeline_mode<synchronous>, transform_indices = @transform_6, window_bounds = array<i64: 256, 256>}, {transform_indices = @transform_7, window_bounds = array<i64: 16, 256>}, {transform_indices = @transform_8, window_bounds = array<i64: 16, 256>}]} {
    %c0 = arith.constant 0 : index
    %c0_0 = arith.constant 0 : index
    %0 = vector.load %arg8[%c0, %c0_0] : memref<16x256xf32, #tpu.memory_space<vmem>>, vector<16x256xf32>
    %c0_1 = arith.constant 0 : index
    %c0_2 = arith.constant 0 : index
    %1 = vector.load %arg1[%c0_1, %c0_2] : memref<16x256xf32, #tpu.memory_space<vmem>>, vector<16x256xf32>
    %c0_3 = arith.constant 0 : index
    %c0_4 = arith.constant 0 : index
    %2 = vector.load %arg2[%c0_3, %c0_4] : memref<16x256xf32, #tpu.memory_space<vmem>>, vector<16x256xf32>
    %c0_5 = arith.constant 0 : index
    %c0_6 = arith.constant 0 : index
    %3 = vector.load %arg3[%c0_5, %c0_6] : memref<16x256xf32, #tpu.memory_space<vmem>>, vector<16x256xf32>
    %4 = vector.extract_strided_slice %0 {offsets = [0, 0], sizes = [16, 128], strides = [1, 1]} : vector<16x256xf32> to vector<16x128xf32>
    %5 = vector.extract_strided_slice %0 {offsets = [0, 128], sizes = [16, 128], strides = [1, 1]} : vector<16x256xf32> to vector<16x128xf32>
    %6 = vector.extract_strided_slice %1 {offsets = [0, 0], sizes = [16, 128], strides = [1, 1]} : vector<16x256xf32> to vector<16x128xf32>
    %7 = vector.extract_strided_slice %1 {offsets = [0, 128], sizes = [16, 128], strides = [1, 1]} : vector<16x256xf32> to vector<16x128xf32>
    %8 = vector.extract_strided_slice %2 {offsets = [0, 0], sizes = [16, 128], strides = [1, 1]} : vector<16x256xf32> to vector<16x128xf32>
    %9 = vector.extract_strided_slice %2 {offsets = [0, 128], sizes = [16, 128], strides = [1, 1]} : vector<16x256xf32> to vector<16x128xf32>
    %10 = vector.extract_strided_slice %3 {offsets = [0, 0], sizes = [16, 128], strides = [1, 1]} : vector<16x256xf32> to vector<16x128xf32>
    %11 = vector.extract_strided_slice %3 {offsets = [0, 128], sizes = [16, 128], strides = [1, 1]} : vector<16x256xf32> to vector<16x128xf32>
    %12 = arith.mulf %4, %6 : vector<16x128xf32>
    %13 = arith.mulf %5, %7 : vector<16x128xf32>
    %14 = arith.subf %12, %13 : vector<16x128xf32>
    %15 = arith.subf %14, %8 : vector<16x128xf32>
    %16 = arith.mulf %4, %7 : vector<16x128xf32>
    %17 = arith.mulf %5, %6 : vector<16x128xf32>
    %18 = arith.addf %16, %17 : vector<16x128xf32>
    %19 = arith.subf %18, %9 : vector<16x128xf32>
    %20 = tpu.concatenate %15, %19 in 1 : vector<16x128xf32>, vector<16x128xf32> -> vector<16x256xf32>
    %c0_7 = arith.constant 0 : index
    %c0_8 = arith.constant 0 : index
    %21 = vector.load %arg6[%c0_7, %c0_8] : memref<256x256xf32, #tpu.memory_space<vmem>>, vector<256x256xf32>
    %cst = arith.constant dense<0.000000e+00> : vector<16x256xf32>
    %22 = tpu.matmul %20, %21, %cst {dimension_numbers = #tpu.dot_dimension_numbers<[1], [0], [0], [1], [0, 0, 1, 1], [], []>} : vector<16x256xf32>, vector<256x256xf32>, vector<16x256xf32> -> vector<16x256xf32>
    %23 = vector.extract_strided_slice %22 {offsets = [0, 0], sizes = [16, 128], strides = [1, 1]} : vector<16x256xf32> to vector<16x128xf32>
    %24 = vector.extract_strided_slice %22 {offsets = [0, 128], sizes = [16, 128], strides = [1, 1]} : vector<16x256xf32> to vector<16x128xf32>
    %25 = tpu.concatenate %23, %24 in 0 : vector<16x128xf32>, vector<16x128xf32> -> vector<32x128xf32>
    %c0_9 = arith.constant 0 : index
    %c0_10 = arith.constant 0 : index
    %26 = vector.load %arg4[%c0_9, %c0_10] : memref<32x32xf32, #tpu.memory_space<vmem>>, vector<32x32xf32>
    %cst_11 = arith.constant dense<0.000000e+00> : vector<32x128xf32>
    %27 = tpu.matmul %26, %25, %cst_11 {dimension_numbers = #tpu.dot_dimension_numbers<[1], [0], [0], [1], [0, 0, 1, 1], [], []>} : vector<32x32xf32>, vector<32x128xf32>, vector<32x128xf32> -> vector<32x128xf32>
    %28 = vector.extract_strided_slice %27 {offsets = [0, 0], sizes = [16, 128], strides = [1, 1]} : vector<32x128xf32> to vector<16x128xf32>
    %29 = vector.extract_strided_slice %27 {offsets = [16, 0], sizes = [16, 128], strides = [1, 1]} : vector<32x128xf32> to vector<16x128xf32>
    %30 = arith.mulf %28, %10 : vector<16x128xf32>
    %31 = arith.mulf %29, %11 : vector<16x128xf32>
    %32 = arith.subf %30, %31 : vector<16x128xf32>
    %33 = arith.mulf %28, %11 : vector<16x128xf32>
    %34 = arith.mulf %29, %10 : vector<16x128xf32>
    %35 = arith.addf %33, %34 : vector<16x128xf32>
    %36 = tpu.concatenate %32, %35 in 0 : vector<16x128xf32>, vector<16x128xf32> -> vector<32x128xf32>
    %c0_12 = arith.constant 0 : index
    %c0_13 = arith.constant 0 : index
    %37 = vector.load %arg5[%c0_12, %c0_13] : memref<32x32xf32, #tpu.memory_space<vmem>>, vector<32x32xf32>
    %cst_14 = arith.constant dense<0.000000e+00> : vector<32x128xf32>
    %38 = tpu.matmul %37, %36, %cst_14 {dimension_numbers = #tpu.dot_dimension_numbers<[1], [0], [0], [1], [0, 0, 1, 1], [], []>} : vector<32x32xf32>, vector<32x128xf32>, vector<32x128xf32> -> vector<32x128xf32>
    %39 = vector.extract_strided_slice %38 {offsets = [0, 0], sizes = [16, 128], strides = [1, 1]} : vector<32x128xf32> to vector<16x128xf32>
    %40 = vector.extract_strided_slice %38 {offsets = [16, 0], sizes = [16, 128], strides = [1, 1]} : vector<32x128xf32> to vector<16x128xf32>
    %41 = tpu.concatenate %39, %40 in 1 : vector<16x128xf32>, vector<16x128xf32> -> vector<16x256xf32>
    %c0_15 = arith.constant 0 : index
    %c0_16 = arith.constant 0 : index
    %42 = vector.load %arg7[%c0_15, %c0_16] : memref<256x256xf32, #tpu.memory_space<vmem>>, vector<256x256xf32>
    %cst_17 = arith.constant dense<0.000000e+00> : vector<16x256xf32>
    %43 = tpu.matmul %41, %42, %cst_17 {dimension_numbers = #tpu.dot_dimension_numbers<[1], [0], [0], [1], [0, 0, 1, 1], [], []>} : vector<16x256xf32>, vector<256x256xf32>, vector<16x256xf32> -> vector<16x256xf32>
    %c0_18 = arith.constant 0 : index
    %c0_19 = arith.constant 0 : index
    %44 = vector.load %arg9[%c0_18, %c0_19] : memref<16x256xf32, #tpu.memory_space<vmem>>, vector<16x256xf32>
    tpu.vector_store %arg9[%c0_18, %c0_19], %43 {strides = array<i32>} : memref<16x256xf32, #tpu.memory_space<vmem>>, vector<16x256xf32>,
    return
  }
  func.func @transform_0(%arg0: i32) -> (i32, i32) {
    %c0_i32 = arith.constant 0 : i32
    %c0_i32_0 = arith.constant 0 : i32
    %c0_i32_1 = arith.constant 0 : i32
    return %c0_i32, %c0_i32_0 : i32, i32
  }
  func.func @transform_1(%arg0: i32) -> (i32, i32) {
    %c0_i32 = arith.constant 0 : i32
    %c0_i32_0 = arith.constant 0 : i32
    %c0_i32_1 = arith.constant 0 : i32
    return %c0_i32, %c0_i32_0 : i32, i32
  }
  func.func @transform_2(%arg0: i32) -> (i32, i32) {
    %c0_i32 = arith.constant 0 : i32
    %c0_i32_0 = arith.constant 0 : i32
    %c0_i32_1 = arith.constant 0 : i32
    return %c0_i32, %c0_i32_0 : i32, i32
  }
  func.func @transform_3(%arg0: i32) -> (i32, i32) {
    %c0_i32 = arith.constant 0 : i32
    %c0_i32_0 = arith.constant 0 : i32
    %c0_i32_1 = arith.constant 0 : i32
    return %c0_i32, %c0_i32_0 : i32, i32
  }
  func.func @transform_4(%arg0: i32) -> (i32, i32) {
    %c0_i32 = arith.constant 0 : i32
    %c0_i32_0 = arith.constant 0 : i32
    %c0_i32_1 = arith.constant 0 : i32
    return %c0_i32, %c0_i32_0 : i32, i32
  }
  func.func @transform_5(%arg0: i32) -> (i32, i32) {
    %c0_i32 = arith.constant 0 : i32
    %c0_i32_0 = arith.constant 0 : i32
    %c0_i32_1 = arith.constant 0 : i32
    return %c0_i32, %c0_i32_0 : i32, i32
  }
  func.func @transform_6(%arg0: i32) -> (i32, i32) {
    %c0_i32 = arith.constant 0 : i32
    %c0_i32_0 = arith.constant 0 : i32
    %c0_i32_1 = arith.constant 0 : i32
    return %c0_i32, %c0_i32_0 : i32, i32
  }
  func.func @transform_7(%arg0: i32) -> (i32, i32) {
    %c0_i32 = arith.constant 0 : i32
    %c0_i32_0 = arith.constant 0 : i32
    return %arg0, %c0_i32 : i32, i32
  }
  func.func @transform_8(%arg0: i32) -> (i32, i32) {
    %c0_i32 = arith.constant 0 : i32
    %c0_i32_0 = arith.constant 0 : i32
    return %arg0, %c0_i32 : i32, i32
  }
}

module attributes {stable_mosaic.version = 11 : i64} {
  func.func @kernel(%arg0: i32, %arg1: memref<16x256xf32, #tpu.memory_space<vmem>>, %arg2: memref<16x256xf32, #tpu.memory_space<vmem>>, %arg3: memref<16x256xf32, #tpu.memory_space<vmem>>, %arg4: memref<32x32xf32, #tpu.memory_space<vmem>>, %arg5: memref<32x32xf32, #tpu.memory_space<vmem>>, %arg6: memref<256x256xf32, #tpu.memory_space<vmem>>, %arg7: memref<256x256xf32, #tpu.memory_space<vmem>>, %arg8: memref<16x256xf32, #tpu.memory_space<vmem>>, %arg9: memref<16x256xf32, #tpu.memory_space<vmem>>) attributes {dimension_semantics = [#tpu.dimension_semantics<parallel>], iteration_bounds = array<i64: 2>, scalar_prefetch = 0 : i64, scratch_operands = 0 : i64, tpu.core_type = #tpu.core_type<tc>, window_params = [{pipeline_mode = #tpu.pipeline_mode<synchronous>, transform_indices = @transform_0, window_bounds = array<i64: 16, 256>}, {pipeline_mode = #tpu.pipeline_mode<synchronous>, transform_indices = @transform_1, window_bounds = array<i64: 16, 256>}, {pipeline_mode = #tpu.pipeline_mode<synchronous>, transform_indices = @transform_2, window_bounds = array<i64: 16, 256>}, {pipeline_mode = #tpu.pipeline_mode<synchronous>, transform_indices = @transform_3, window_bounds = array<i64: 32, 32>}, {pipeline_mode = #tpu.pipeline_mode<synchronous>, transform_indices = @transform_4, window_bounds = array<i64: 32, 32>}, {pipeline_mode = #tpu.pipeline_mode<synchronous>, transform_indices = @transform_5, window_bounds = array<i64: 256, 256>}, {pipeline_mode = #tpu.pipeline_mode<synchronous>, transform_indices = @transform_6, window_bounds = array<i64: 256, 256>}, {transform_indices = @transform_7, window_bounds = array<i64: 16, 256>}, {transform_indices = @transform_8, window_bounds = array<i64: 16, 256>}]} {
    %c0 = arith.constant 0 : index
    %c0_0 = arith.constant 0 : index
    %0 = vector.load %arg8[%c0, %c0_0] : memref<16x256xf32, #tpu.memory_space<vmem>>, vector<16x256xf32>
    %c0_1 = arith.constant 0 : index
    %c0_2 = arith.constant 0 : index
    %1 = vector.load %arg1[%c0_1, %c0_2] : memref<16x256xf32, #tpu.memory_space<vmem>>, vector<16x256xf32>
    %c0_3 = arith.constant 0 : index
    %c0_4 = arith.constant 0 : index
    %2 = vector.load %arg2[%c0_3, %c0_4] : memref<16x256xf32, #tpu.memory_space<vmem>>, vector<16x256xf32>
    %c0_5 = arith.constant 0 : index
    %c0_6 = arith.constant 0 : index
    %3 = vector.load %arg3[%c0_5, %c0_6] : memref<16x256xf32, #tpu.memory_space<vmem>>, vector<16x256xf32>
    %4 = vector.extract_strided_slice %0 {offsets = [0, 0], sizes = [16, 128], strides = [1, 1]} : vector<16x256xf32> to vector<16x128xf32>
    %5 = vector.extract_strided_slice %0 {offsets = [0, 128], sizes = [16, 128], strides = [1, 1]} : vector<16x256xf32> to vector<16x128xf32>
    %6 = vector.extract_strided_slice %1 {offsets = [0, 0], sizes = [16, 128], strides = [1, 1]} : vector<16x256xf32> to vector<16x128xf32>
    %7 = vector.extract_strided_slice %1 {offsets = [0, 128], sizes = [16, 128], strides = [1, 1]} : vector<16x256xf32> to vector<16x128xf32>
    %8 = vector.extract_strided_slice %2 {offsets = [0, 0], sizes = [16, 128], strides = [1, 1]} : vector<16x256xf32> to vector<16x128xf32>
    %9 = vector.extract_strided_slice %2 {offsets = [0, 128], sizes = [16, 128], strides = [1, 1]} : vector<16x256xf32> to vector<16x128xf32>
    %10 = vector.extract_strided_slice %3 {offsets = [0, 0], sizes = [16, 128], strides = [1, 1]} : vector<16x256xf32> to vector<16x128xf32>
    %11 = vector.extract_strided_slice %3 {offsets = [0, 128], sizes = [16, 128], strides = [1, 1]} : vector<16x256xf32> to vector<16x128xf32>
    %12 = arith.mulf %4, %6 : vector<16x128xf32>
    %13 = arith.mulf %5, %7 : vector<16x128xf32>
    %14 = arith.subf %12, %13 : vector<16x128xf32>
    %15 = arith.subf %14, %8 : vector<16x128xf32>
    %16 = arith.mulf %4, %7 : vector<16x128xf32>
    %17 = arith.mulf %5, %6 : vector<16x128xf32>
    %18 = arith.addf %16, %17 : vector<16x128xf32>
    %19 = arith.subf %18, %9 : vector<16x128xf32>
    %20 = tpu.concatenate %15, %19 in 1 : vector<16x128xf32>, vector<16x128xf32> -> vector<16x256xf32>
    %c0_7 = arith.constant 0 : index
    %c0_8 = arith.constant 0 : index
    %21 = vector.load %arg6[%c0_7, %c0_8] : memref<256x256xf32, #tpu.memory_space<vmem>>, vector<256x256xf32>
    %cst = arith.constant dense<0.000000e+00> : vector<16x256xf32>
    %22 = tpu.matmul %20, %21, %cst {dimension_numbers = #tpu.dot_dimension_numbers<[1], [0], [0], [1], [0, 0, 1, 1], [], []>} : vector<16x256xf32>, vector<256x256xf32>, vector<16x256xf32> -> vector<16x256xf32>
    %23 = vector.extract_strided_slice %22 {offsets = [0, 0], sizes = [16, 128], strides = [1, 1]} : vector<16x256xf32> to vector<16x128xf32>
    %24 = vector.extract_strided_slice %22 {offsets = [0, 128], sizes = [16, 128], strides = [1, 1]} : vector<16x256xf32> to vector<16x128xf32>
    %25 = tpu.concatenate %23, %24 in 0 : vector<16x128xf32>, vector<16x128xf32> -> vector<32x128xf32>
    %c0_9 = arith.constant 0 : index
    %c0_10 = arith.constant 0 : index
    %26 = vector.load %arg4[%c0_9, %c0_10] : memref<32x32xf32, #tpu.memory_space<vmem>>, vector<32x32xf32>
    %cst_11 = arith.constant dense<0.000000e+00> : vector<32x128xf32>
    %27 = tpu.matmul %26, %25, %cst_11 {dimension_numbers = #tpu.dot_dimension_numbers<[1], [0], [0], [1], [0, 0, 1, 1], [], []>} : vector<32x32xf32>, vector<32x128xf32>, vector<32x128xf32> -> vector<32x128xf32>
    %28 = vector.extract_strided_slice %27 {offsets = [0, 0], sizes = [16, 128], strides = [1, 1]} : vector<32x128xf32> to vector<16x128xf32>
    %29 = vector.extract_strided_slice %27 {offsets = [16, 0], sizes = [16, 128], strides = [1, 1]} : vector<32x128xf32> to vector<16x128xf32>
    %30 = arith.mulf %28, %10 : vector<16x128xf32>
    %31 = arith.mulf %29, %11 : vector<16x128xf32>
    %32 = arith.subf %30, %31 : vector<16x128xf32>
    %33 = arith.mulf %28, %11 : vector<16x128xf32>
    %34 = arith.mulf %29, %10 : vector<16x128xf32>
    %35 = arith.addf %33, %34 : vector<16x128xf32>
    %36 = tpu.concatenate %32, %35 in 0 : vector<16x128xf32>, vector<16x128xf32> -> vector<32x128xf32>
    %c0_12 = arith.constant 0 : index
    %c0_13 = arith.constant 0 : index
    %37 = vector.load %arg5[%c0_12, %c0_13] : memref<32x32xf32, #tpu.memory_space<vmem>>, vector<32x32xf32>
    %cst_14 = arith.constant dense<0.000000e+00> : vector<32x128xf32>
    %38 = tpu.matmul %37, %36, %cst_14 {dimension_numbers = #tpu.dot_dimension_numbers<[1], [0], [0], [1], [0, 0, 1, 1], [], []>} : vector<32x32xf32>, vector<32x128xf32>, vector<32x128xf32> -> vector<32x128xf32>
    %39 = vector.extract_strided_slice %38 {offsets = [0, 0], sizes = [16, 128], strides = [1, 1]} : vector<32x128xf32> to vector<16x128xf32>
    %40 = vector.extract_strided_slice %38 {offsets = [16, 0], sizes = [16, 128], strides = [1, 1]} : vector<32x128xf32> to vector<16x128xf32>
    %41 = tpu.concatenate %39, %40 in 1 : vector<16x128xf32>, vector<16x128xf32> -> vector<16x256xf32>
    %c0_15 = arith.constant 0 : index
    %c0_16 = arith.constant 0 : index
    %42 = vector.load %arg7[%c0_15, %c0_16] : memref<256x256xf32, #tpu.memory_space<vmem>>, vector<256x256xf32>
    %cst_17 = arith.constant dense<0.000000e+00> : vector<16x256xf32>
    %43 = tpu.matmul %41, %42, %cst_17 {dimension_numbers = #tpu.dot_dimension_numbers<[1], [0], [0], [1], [0, 0, 1, 1], [], []>} : vector<16x256xf32>, vector<256x256xf32>, vector<16x256xf32> -> vector<16x256xf32>
    %c0_18 = arith.constant 0 : index
    %c0_19 = arith.constant 0 : index
    %44 = vector.load %arg9[%c0_18, %c0_19] : memref<16x256xf32, #tpu.memory_space<vmem>>, vector<16x256xf32>
    tpu.vector_store %arg9[%c0_18, %c0_19], %43 {strides = array<i32>} : memref<16x256xf32, #tpu.memory_space<vmem>>, vector<16x256xf32>,
    return
  }
  func.func @transform_0(%arg0: i32) -> (i32, i32) {
    %c0_i32 = arith.constant 0 : i32
    %c0_i32_0 = arith.constant 0 : i32
    %c0_i32_1 = arith.constant 0 : i32
    return %c0_i32, %c0_i32_0 : i32, i32
  }
  func.func @transform_1(%arg0: i32) -> (i32, i32) {
    %c0_i32 = arith.constant 0 : i32
    %c0_i32_0 = arith.constant 0 : i32
    %c0_i32_1 = arith.constant 0 : i32
    return %c0_i32, %c0_i32_0 : i32, i32
  }
  func.func @transform_2(%arg0: i32) -> (i32, i32) {
    %c0_i32 = arith.constant 0 : i32
    %c0_i32_0 = arith.constant 0 : i32
    %c0_i32_1 = arith.constant 0 : i32
    return %c0_i32, %c0_i32_0 : i32, i32
  }
  func.func @transform_3(%arg0: i32) -> (i32, i32) {
    %c0_i32 = arith.constant 0 : i32
    %c0_i32_0 = arith.constant 0 : i32
    %c0_i32_1 = arith.constant 0 : i32
    return %c0_i32, %c0_i32_0 : i32, i32
  }
  func.func @transform_4(%arg0: i32) -> (i32, i32) {
    %c0_i32 = arith.constant 0 : i32
    %c0_i32_0 = arith.constant 0 : i32
    %c0_i32_1 = arith.constant 0 : i32
    return %c0_i32, %c0_i32_0 : i32, i32
  }
  func.func @transform_5(%arg0: i32) -> (i32, i32) {
    %c0_i32 = arith.constant 0 : i32
    %c0_i32_0 = arith.constant 0 : i32
    %c0_i32_1 = arith.constant 0 : i32
    return %c0_i32, %c0_i32_0 : i32, i32
  }
  func.func @transform_6(%arg0: i32) -> (i32, i32) {
    %c0_i32 = arith.constant 0 : i32
    %c0_i32_0 = arith.constant 0 : i32
    %c0_i32_1 = arith.constant 0 : i32
    return %c0_i32, %c0_i32_0 : i32, i32
  }
  func.func @transform_7(%arg0: i32) -> (i32, i32) {
    %c0_i32 = arith.constant 0 : i32
    %c0_i32_0 = arith.constant 0 : i32
    return %arg0, %c0_i32 : i32, i32
  }
  func.func @transform_8(%arg0: i32) -> (i32, i32) {
    %c0_i32 = arith.constant 0 : i32
    %c0_i32_0 = arith.constant 0 : i32
    return %arg0, %c0_i32 : i32, i32
  }
}

</mosaic_0001>

<llo_original>
// kernel: tpu_custom_call.1
$region0: #{tpu_custom_call.1}
  #allocation0 [shape = 'u32[]', space=smem, size = 0x4, offset = 0x4, fixed_abs, tag = 'smem constant byte address 0x4 - core index']
  #allocation1 [shape = 'u32[144,128]{1,0:T(1,128)}', space=vmem, size = 0x12000, scoped, tag = 'internal scratch']
  %s0 = inlined_call_operand.hbm [shape: f32[16,256], index: 0, kind: input, shape index: {}]
  %s1 = inlined_call_operand.hbm [shape: f32[16,256], index: 1, kind: input, shape index: {}]
  %s2 = inlined_call_operand.hbm [shape: f32[16,256], index: 2, kind: input, shape index: {}]
  %s3 = inlined_call_operand.hbm [shape: f32[32,32], index: 3, kind: input, shape index: {}]
  %s4 = inlined_call_operand.hbm [shape: f32[32,32], index: 4, kind: input, shape index: {}]
  %s5 = inlined_call_operand.hbm [shape: f32[256,256], index: 5, kind: input, shape index: {}]
  %s6 = inlined_call_operand.hbm [shape: f32[256,256], index: 6, kind: input, shape index: {}]
  %s7 = inlined_call_operand.hbm [shape: f32[32,256], index: 7, kind: input, shape index: {}]
  %s8 = inlined_call_operand.hbm [shape: f32[32,256], index: 8, kind: output, shape index: {}]
  %s9 = sld [smem:[#allocation0]]
  $region97: #{tpu_custom_call.1} parent=0
    _
  %s11 = ssub.s32 1, %s9
  %s12 = scalar_select 0, %s11, %s9
  $region1: #{tpu_custom_call.1} parent=0
    #allocation2 [shape = 'u8[16384]{0}', space=vmem, size = 0x4000, scoped, tag = 'input window, operand 0, single buffered']
    #allocation3 [shape = 's32[2]{0}', space=sflag, size = 0x8, scoped, tag = 'scoped memory for tpu_custom_call.1']
    #allocation4 [shape = 's32[2]{0}', space=sflag, size = 0x8, scoped, tag = 'scoped memory for tpu_custom_call.1']
    #allocation5 [shape = 'u8[16384]{0}', space=vmem, size = 0x4000, scoped, tag = 'input window, operand 1, single buffered']
    #allocation6 [shape = 's32[1]{0}', space=sflag, size = 0x4, scoped, tag = 'scoped memory for tpu_custom_call.1']
    #allocation7 [shape = 'u8[16384]{0}', space=vmem, size = 0x4000, scoped, tag = 'input window, operand 2, single buffered']
    #allocation8 [shape = 'u8[16384]{0}', space=vmem, size = 0x4000, scoped, tag = 'input window, operand 3, single buffered']
    #allocation9 [shape = 's32[1]{0}', space=sflag, size = 0x4, scoped, tag = 'scoped memory for tpu_custom_call.1']
    #allocation10 [shape = 'u8[16384]{0}', space=vmem, size = 0x4000, scoped, tag = 'input window, operand 4, single buffered']
    #allocation11 [shape = 'u8[262144]{0}', space=vmem, size = 0x40000, scoped, tag = 'input window, operand 5, single buffered']
    #allocation12 [shape = 's32[1]{0}', space=sflag, size = 0x4, scoped, tag = 'scoped memory for tpu_custom_call.1']
    #allocation13 [shape = 'u8[262144]{0}', space=vmem, size = 0x40000, scoped, tag = 'input window, operand 6, single buffered']
    #allocation14 [shape = 'u8[32768]{0}', space=vmem, size = 0x8000, scoped, tag = 'input window, operand 7']
    #allocation15 [shape = 's32[2]{0}', space=sflag, size = 0x8, scoped, tag = 'scoped memory for tpu_custom_call.1']
    #allocation16 [shape = 'u8[32768]{0}', space=vmem, size = 0x8000, scoped, tag = 'output window, operand 0']
    %13 = vsyncpa [#allocation3], 0
    %14 = vsyncpa [#allocation6], 0
    %15 = vsyncpa [#allocation9], 0
    %16 = vsyncpa [#allocation12], 0
    %17 = vsyncpa [#allocation15], 0
    %s18 = scalar_lea.sflag [#allocation15], 1
    %19 = vsyncpa %s18, 0
    %20 = vsyncpa [#allocation4], 0
    %s21 = scalar_lea.sflag [#allocation4], 1
    %22 = vsyncpa %s21, 0
    loop: start=0, step=1, limit=4
    $region2: #{tpu_custom_call.1} parent=1 // loop_pre_header
      _
    $region3: #{tpu_custom_call.1} parent=1 // loop_header
      %s24 = sphi 0, %s28
      %p25 = scmp.ge.s32.totalorder %s24, 4
      %s32 = sphi 0, %s32
      %s34 = sphi 0, %s32
      %s35 = sphi 0, %s34
      %s49 = sphi 0, %s35
      %s53 = sphi 0, %s53
      %s55 = sphi 0, %s53
      %s56 = sphi 0, %s55
      %s70 = sphi 0, %s56
      %s74 = sphi 0, %s74
      %s76 = sphi 0, %s74
      %s77 = sphi 0, %s76
      %s91 = sphi 0, %s77
      %s95 = sphi 0, %s95
      %s97 = sphi 0, %s95
      %s98 = sphi 0, %s97
      %s112 = sphi 0, %s98
      %s116 = sphi 0, %s116
      %s118 = sphi 0, %s116
      %s119 = sphi 0, %s118
      %s133 = sphi 0, %s119
      %s137 = sphi 0, %s137
      %s139 = sphi 0, %s137
      %s140 = sphi 0, %s139
      %s154 = sphi 0, %s140
      %s158 = sphi 0, %s158
      %s160 = sphi 0, %s158
      %s161 = sphi 0, %s160
      %s175 = sphi 0, %s161
      %s181 = sphi 0, %s183
      %s184 = sphi 0, %s181
      %s185 = sphi 0, %s184
      %s201 = sphi 0, %s185
      %s207 = sphi 0, %s209
      %s210 = sphi 0, %s207
      %s211 = sphi 0, %s210
      %s227 = sphi 0, %s211
    $region4: #{tpu_custom_call.1} parent=1 // loop_header_branch
      %27 = sbr.rel (%p25) target = $region8
    $region5: #{tpu_custom_call.1} parent=1 // loop_body
      %s29 = ssub.s32 %s24, 1
      %s30 = ssub.s32 %s24, 2
      %s31 = sadd.s32 %s24, 1
      %s33 = sadd.s32 %s32, 1
      %p36 = scmp.eq.s32.totalorder %s24, 1
      %p37 = scmp.ne.s32.totalorder %s32, %s34
      %p38 = scmp.eq.s32.totalorder %s24, 0
      %p39 = por %p37, %p38
      %p40 = scmp.ne.s32.totalorder %s32, %s34
      %p41 = scmp.eq.s32.totalorder %s29, 1
      %p42 = por %p40, %p41
      %p43 = scmp.ne.s32.totalorder %s34, %s35
      %p44 = scmp.eq.s32.totalorder %s29, 0
      %p45 = por %p43, %p44
      %p46 = scmp.ne.s32.totalorder %s34, %s35
      %p47 = scmp.eq.s32.totalorder %s30, 1
      %p48 = por %p46, %p47
      %p50 = scmp.ne.s32.totalorder %s35, %s49
      %p51 = scmp.eq.s32.totalorder %s30, 0
      %p52 = por %p50, %p51
      %s54 = sadd.s32 %s53, 1
      %p57 = scmp.eq.s32.totalorder %s24, 1
      %p58 = scmp.ne.s32.totalorder %s53, %s55
      %p59 = scmp.eq.s32.totalorder %s24, 0
      %p60 = por %p58, %p59
      %p61 = scmp.ne.s32.totalorder %s53, %s55
      %p62 = scmp.eq.s32.totalorder %s29, 1
      %p63 = por %p61, %p62
      %p64 = scmp.ne.s32.totalorder %s55, %s56
      %p65 = scmp.eq.s32.totalorder %s29, 0
      %p66 = por %p64, %p65
      %p67 = scmp.ne.s32.totalorder %s55, %s56
      %p68 = scmp.eq.s32.totalorder %s30, 1
      %p69 = por %p67, %p68
      %p71 = scmp.ne.s32.totalorder %s56, %s70
      %p72 = scmp.eq.s32.totalorder %s30, 0
      %p73 = por %p71, %p72
      %s75 = sadd.s32 %s74, 1
      %p78 = scmp.eq.s32.totalorder %s24, 1
      %p79 = scmp.ne.s32.totalorder %s74, %s76
      %p80 = scmp.eq.s32.totalorder %s24, 0
      %p81 = por %p79, %p80
      %p82 = scmp.ne.s32.totalorder %s74, %s76
      %p83 = scmp.eq.s32.totalorder %s29, 1
      %p84 = por %p82, %p83
      %p85 = scmp.ne.s32.totalorder %s76, %s77
      %p86 = scmp.eq.s32.totalorder %s29, 0
      %p87 = por %p85, %p86
      %p88 = scmp.ne.s32.totalorder %s76, %s77
      %p89 = scmp.eq.s32.totalorder %s30, 1
      %p90 = por %p88, %p89
      %p92 = scmp.ne.s32.totalorder %s77, %s91
      %p93 = scmp.eq.s32.totalorder %s30, 0
      %p94 = por %p92, %p93
      %s96 = sadd.s32 %s95, 1
      %p99 = scmp.eq.s32.totalorder %s24, 1
      %p100 = scmp.ne.s32.totalorder %s95, %s97
      %p101 = scmp.eq.s32.totalorder %s24, 0
      %p102 = por %p100, %p101
      %p103 = scmp.ne.s32.totalorder %s95, %s97
      %p104 = scmp.eq.s32.totalorder %s29, 1
      %p105 = por %p103, %p104
      %p106 = scmp.ne.s32.totalorder %s97, %s98
      %p107 = scmp.eq.s32.totalorder %s29, 0
      %p108 = por %p106, %p107
      %p109 = scmp.ne.s32.totalorder %s97, %s98
      %p110 = scmp.eq.s32.totalorder %s30, 1
      %p111 = por %p109, %p110
      %p113 = scmp.ne.s32.totalorder %s98, %s112
      %p114 = scmp.eq.s32.totalorder %s30, 0
      %p115 = por %p113, %p114
      %s117 = sadd.s32 %s116, 1
      %p120 = scmp.eq.s32.totalorder %s24, 1
      %p121 = scmp.ne.s32.totalorder %s116, %s118
      %p122 = scmp.eq.s32.totalorder %s24, 0
      %p123 = por %p121, %p122
      %p124 = scmp.ne.s32.totalorder %s116, %s118
      %p125 = scmp.eq.s32.totalorder %s29, 1
      %p126 = por %p124, %p125
      %p127 = scmp.ne.s32.totalorder %s118, %s119
      %p128 = scmp.eq.s32.totalorder %s29, 0
      %p129 = por %p127, %p128
      %p130 = scmp.ne.s32.totalorder %s118, %s119
      %p131 = scmp.eq.s32.totalorder %s30, 1
      %p132 = por %p130, %p131
      %p134 = scmp.ne.s32.totalorder %s119, %s133
      %p135 = scmp.eq.s32.totalorder %s30, 0
      %p136 = por %p134, %p135
      %s138 = sadd.s32 %s137, 1
      %p141 = scmp.eq.s32.totalorder %s24, 1
      %p142 = scmp.ne.s32.totalorder %s137, %s139
      %p143 = scmp.eq.s32.totalorder %s24, 0
      %p144 = por %p142, %p143
      %p145 = scmp.ne.s32.totalorder %s137, %s139
      %p146 = scmp.eq.s32.totalorder %s29, 1
      %p147 = por %p145, %p146
      %p148 = scmp.ne.s32.totalorder %s139, %s140
      %p149 = scmp.eq.s32.totalorder %s29, 0
      %p150 = por %p148, %p149
      %p151 = scmp.ne.s32.totalorder %s139, %s140
      %p152 = scmp.eq.s32.totalorder %s30, 1
      %p153 = por %p151, %p152
      %p155 = scmp.ne.s32.totalorder %s140, %s154
      %p156 = scmp.eq.s32.totalorder %s30, 0
      %p157 = por %p155, %p156
      %s159 = sadd.s32 %s158, 1
      %p162 = scmp.eq.s32.totalorder %s24, 1
      %p163 = scmp.ne.s32.totalorder %s158, %s160
      %p164 = scmp.eq.s32.totalorder %s24, 0
      %p165 = por %p163, %p164
      %p166 = scmp.ne.s32.totalorder %s158, %s160
      %p167 = scmp.eq.s32.totalorder %s29, 1
      %p168 = por %p166, %p167
      %p169 = scmp.ne.s32.totalorder %s160, %s161
      %p170 = scmp.eq.s32.totalorder %s29, 0
      %p171 = por %p169, %p170
      %p172 = scmp.ne.s32.totalorder %s160, %s161
      %p173 = scmp.eq.s32.totalorder %s30, 1
      %p174 = por %p172, %p173
      %p176 = scmp.ne.s32.totalorder %s161, %s175
      %p177 = scmp.eq.s32.totalorder %s30, 0
      %p178 = por %p176, %p177
      %s179 = ssub.s32 %s24, %s31
      %p180 = scmp.eq.s32.totalorder %s179, 0
      %s182 = sadd.s32 %s181, 1
      %s183 = scalar_select %p180, %s181, %s182
      %p186 = pneg %p180
      %p187 = scmp.eq.s32.totalorder %s24, 1
      %p188 = por %p186, %p187
      %p189 = scmp.ne.s32.totalorder %s181, %s184
      %p190 = scmp.eq.s32.totalorder %s24, 0
      %p191 = por %p189, %p190
      %p192 = scmp.ne.s32.totalorder %s181, %s184
      %p193 = scmp.eq.s32.totalorder %s29, 1
      %p194 = por %p192, %p193
      %p195 = scmp.ne.s32.totalorder %s184, %s185
      %p196 = scmp.eq.s32.totalorder %s29, 0
      %p197 = por %p195, %p196
      %p198 = scmp.ne.s32.totalorder %s184, %s185
      %p199 = scmp.eq.s32.totalorder %s30, 1
      %p200 = por %p198, %p199
      %p202 = scmp.ne.s32.totalorder %s185, %s201
      %p203 = scmp.eq.s32.totalorder %s30, 0
      %p204 = por %p202, %p203
      %s205 = ssub.s32 %s24, %s31
      %p206 = scmp.eq.s32.totalorder %s205, 0
      %s208 = sadd.s32 %s207, 1
      %s209 = scalar_select %p206, %s207, %s208
      %p212 = pneg %p206
      %p213 = scmp.eq.s32.totalorder %s24, 1
      %p214 = por %p212, %p213
      %p215 = scmp.ne.s32.totalorder %s207, %s210
      %p216 = scmp.eq.s32.totalorder %s24, 0
      %p217 = por %p215, %p216
      %p218 = scmp.ne.s32.totalorder %s207, %s210
      %p219 = scmp.eq.s32.totalorder %s29, 1
      %p220 = por %p218, %p219
      %p221 = scmp.ne.s32.totalorder %s210, %s211
      %p222 = scmp.eq.s32.totalorder %s29, 0
      %p223 = por %p221, %p222
      %p224 = scmp.ne.s32.totalorder %s210, %s211
      %p225 = scmp.eq.s32.totalorder %s30, 1
      %p226 = por %p224, %p225
      %p228 = scmp.ne.s32.totalorder %s211, %s227
      %p229 = scmp.eq.s32.totalorder %s30, 0
      %p230 = por %p228, %p229
      %p231 = scmp.le.s32.totalorder 1, %s24
      %p232 = scmp.lt.s32.totalorder %s24, 3
      %p233 = pnand %p231, %p232
      %p234 = pneg %p233
      // Predicated region
      $region9: #{tpu_custom_call.1} parent=5 // pred_check
        _
      $region10: #{tpu_custom_call.1} parent=5 // pred_check_branch
        %236 = sbr.rel (%p233) target = $region12
      $region11: #{tpu_custom_call.1} parent=5 // pred_region
        %s237 = ssub.s32 %s24, 1
        // Predicated region
        $region13: #{tpu_custom_call.1} parent=11 // pred_check
          %p238 = pneg %p45
        $region14: #{tpu_custom_call.1} parent=11 // pred_check_branch
          %240 = sbr.rel (%p238) target = $region16
        $region15: #{tpu_custom_call.1} parent=11 // pred_region
          %s242 = ssub.s32 512, 512
          %243 = vsyncadd [#allocation3], %s242
          %s244 = sshll.u32 [#allocation2], 4
          %s245 = int_to_ptr.vmem [resolvable:$true] %s244
          %250 = dma.hbm_to_vmem [thread:$0]  %s0, 512, %s245, [#allocation3], 256, 256, 16
        $region16: #{tpu_custom_call.1} parent=11 // pred_fallthru
          _
        // Predicated region
        $region17: #{tpu_custom_call.1} parent=11 // pred_check
          %p251 = pneg %p66
        $region18: #{tpu_custom_call.1} parent=11 // pred_check_branch
          %253 = sbr.rel (%p251) target = $region20
        $region19: #{tpu_custom_call.1} parent=11 // pred_region
          %s255 = ssub.s32 512, 512
          %256 = vsyncadd [#allocation6], %s255
          %s257 = sshll.u32 [#allocation5], 4
          %s258 = int_to_ptr.vmem [resolvable:$true] %s257
          %263 = dma.hbm_to_vmem [thread:$0]  %s1, 512, %s258, [#allocation6], 256, 256, 16
        $region20: #{tpu_custom_call.1} parent=11 // pred_fallthru
          _
        // Predicated region
        $region21: #{tpu_custom_call.1} parent=11 // pred_check
          %p264 = pneg %p87
        $region22: #{tpu_custom_call.1} parent=11 // pred_check_branch
          %266 = sbr.rel (%p264) target = $region24
        $region23: #{tpu_custom_call.1} parent=11 // pred_region
          %s268 = ssub.s32 512, 512
          %269 = vsyncadd [#allocation6], %s268
          %s270 = sshll.u32 [#allocation7], 4
          %s271 = int_to_ptr.vmem [resolvable:$true] %s270
          %276 = dma.hbm_to_vmem [thread:$0]  %s2, 512, %s271, [#allocation6], 256, 256, 16
        $region24: #{tpu_custom_call.1} parent=11 // pred_fallthru
          _
        // Predicated region
        $region25: #{tpu_custom_call.1} parent=11 // pred_check
          %p277 = pneg %p108
        $region26: #{tpu_custom_call.1} parent=11 // pred_check_branch
          %279 = sbr.rel (%p277) target = $region28
        $region27: #{tpu_custom_call.1} parent=11 // pred_region
          %s281 = ssub.s32 512, 512
          %282 = vsyncadd [#allocation9], %s281
          %s283 = sshll.u32 [#allocation8], 4
          %s284 = int_to_ptr.vmem [resolvable:$true] %s283
          %289 = dma.hbm_to_vmem [thread:$0]  %s3, 512, %s284, [#allocation9], 128, 128, 8
        $region28: #{tpu_custom_call.1} parent=11 // pred_fallthru
          _
        // Predicated region
        $region29: #{tpu_custom_call.1} parent=11 // pred_check
          %p290 = pneg %p129
        $region30: #{tpu_custom_call.1} parent=11 // pred_check_branch
          %292 = sbr.rel (%p290) target = $region32
        $region31: #{tpu_custom_call.1} parent=11 // pred_region
          %s294 = ssub.s32 512, 512
          %295 = vsyncadd [#allocation9], %s294
          %s296 = sshll.u32 [#allocation10], 4
          %s297 = int_to_ptr.vmem [resolvable:$true] %s296
          %302 = dma.hbm_to_vmem [thread:$0]  %s4, 512, %s297, [#allocation9], 128, 128, 8
        $region32: #{tpu_custom_call.1} parent=11 // pred_fallthru
          _
        // Predicated region
        $region33: #{tpu_custom_call.1} parent=11 // pred_check
          %p303 = pneg %p150
        $region34: #{tpu_custom_call.1} parent=11 // pred_check_branch
          %305 = sbr.rel (%p303) target = $region36
        $region35: #{tpu_custom_call.1} parent=11 // pred_region
          %s307 = ssub.s32 8192, 8192
          %308 = vsyncadd [#allocation12], %s307
          %s309 = sshll.u32 [#allocation11], 4
          %s310 = int_to_ptr.vmem [resolvable:$true] %s309
          %315 = dma.hbm_to_vmem [thread:$0]  %s5, 8192, %s310, [#allocation12], 256, 256, 16
        $region36: #{tpu_custom_call.1} parent=11 // pred_fallthru
          _
        // Predicated region
        $region37: #{tpu_custom_call.1} parent=11 // pred_check
          %p316 = pneg %p171
        $region38: #{tpu_custom_call.1} parent=11 // pred_check_branch
          %318 = sbr.rel (%p316) target = $region40
        $region39: #{tpu_custom_call.1} parent=11 // pred_region
          %s320 = ssub.s32 8192, 8192
          %321 = vsyncadd [#allocation12], %s320
          %s322 = sshll.u32 [#allocation13], 4
          %s323 = int_to_ptr.vmem [resolvable:$true] %s322
          %328 = dma.hbm_to_vmem [thread:$0]  %s6, 8192, %s323, [#allocation12], 256, 256, 16
        $region40: #{tpu_custom_call.1} parent=11 // pred_fallthru
          _
      $region12: #{tpu_custom_call.1} parent=5 // pred_fallthru
        _
      %p329 = scmp.lt.s32.totalorder %s24, 2
      // Predicated region
      $region41: #{tpu_custom_call.1} parent=5 // pred_check
        %p330 = pneg %p329
      $region42: #{tpu_custom_call.1} parent=5 // pred_check_branch
        %332 = sbr.rel (%p330) target = $region44
      $region43: #{tpu_custom_call.1} parent=5 // pred_region
        // Predicated region
        $region45: #{tpu_custom_call.1} parent=43 // pred_check
          %p333 = pneg %p191
        $region46: #{tpu_custom_call.1} parent=43 // pred_check_branch
          %335 = sbr.rel (%p333) target = $region48
        $region47: #{tpu_custom_call.1} parent=43 // pred_region
          %s336 = sand.u32 %s181, 1
          %s337 = scalar_lea.sflag [#allocation15], %s336
          %s338 = sand.u32 %s181, 1
          %s339 = smul.addr %s338, 32
          %s340 = scalar_lea.vmem [#allocation14], %s339
          %s341 = smul.u32 2, %s24
          %s343 = ssub.s32 512, 512
          %344 = vsyncadd %s337, %s343
          %s345 = smul.addr %s341, 2
          %s346 = smul.addr %s345, 128
          %s347 = scalar_lea.hbm %s7, %s346
          %s348 = sshll.u32 %s340, 4
          %s349 = int_to_ptr.vmem [resolvable:$true] %s348
          %354 = dma.hbm_to_vmem [thread:$0]  %s347, 512, %s349, %s337, 256, 256, 16
        $region48: #{tpu_custom_call.1} parent=43 // pred_fallthru
          _
      $region44: #{tpu_custom_call.1} parent=5 // pred_fallthru
        _
      %p355 = scmp.le.s32.totalorder 1, %s24
      %p356 = scmp.lt.s32.totalorder %s24, 3
      %p357 = pnand %p355, %p356
      %p358 = pneg %p357
      // Predicated region
      $region49: #{tpu_custom_call.1} parent=5 // pred_check
        _
      $region50: #{tpu_custom_call.1} parent=5 // pred_check_branch
        %360 = sbr.rel (%p357) target = $region52
      $region51: #{tpu_custom_call.1} parent=5 // pred_region
        %s361 = ssub.s32 %s24, 1
        // Predicated region
        $region53: #{tpu_custom_call.1} parent=51 // pred_check
          %p362 = pneg %p45
        $region54: #{tpu_custom_call.1} parent=51 // pred_check_branch
          %364 = sbr.rel (%p362) target = $region56
        $region55: #{tpu_custom_call.1} parent=51 // pred_region
          %365 = dma.done [#allocation3], 512
        $region56: #{tpu_custom_call.1} parent=51 // pred_fallthru
          _
        // Predicated region
        $region57: #{tpu_custom_call.1} parent=51 // pred_check
          %p366 = pneg %p66
        $region58: #{tpu_custom_call.1} parent=51 // pred_check_branch
          %368 = sbr.rel (%p366) target = $region60
        $region59: #{tpu_custom_call.1} parent=51 // pred_region
          %369 = dma.done [#allocation6], 512
        $region60: #{tpu_custom_call.1} parent=51 // pred_fallthru
          _
        // Predicated region
        $region61: #{tpu_custom_call.1} parent=51 // pred_check
          %p370 = pneg %p87
        $region62: #{tpu_custom_call.1} parent=51 // pred_check_branch
          %372 = sbr.rel (%p370) target = $region64
        $region63: #{tpu_custom_call.1} parent=51 // pred_region
          %373 = dma.done [#allocation6], 512
        $region64: #{tpu_custom_call.1} parent=51 // pred_fallthru
          _
        // Predicated region
        $region65: #{tpu_custom_call.1} parent=51 // pred_check
          %p374 = pneg %p108
        $region66: #{tpu_custom_call.1} parent=51 // pred_check_branch
          %376 = sbr.rel (%p374) target = $region68
        $region67: #{tpu_custom_call.1} parent=51 // pred_region
          %377 = dma.done [#allocation9], 512
        $region68: #{tpu_custom_call.1} parent=51 // pred_fallthru
          _
        // Predicated region
        $region69: #{tpu_custom_call.1} parent=51 // pred_check
          %p378 = pneg %p129
        $region70: #{tpu_custom_call.1} parent=51 // pred_check_branch
          %380 = sbr.rel (%p378) target = $region72
        $region71: #{tpu_custom_call.1} parent=51 // pred_region
          %381 = dma.done [#allocation9], 512
        $region72: #{tpu_custom_call.1} parent=51 // pred_fallthru
          _
        // Predicated region
        $region73: #{tpu_custom_call.1} parent=51 // pred_check
          %p382 = pneg %p150
        $region74: #{tpu_custom_call.1} parent=51 // pred_check_branch
          %384 = sbr.rel (%p382) target = $region76
        $region75: #{tpu_custom_call.1} parent=51 // pred_region
          %385 = dma.done [#allocation12], 8192
        $region76: #{tpu_custom_call.1} parent=51 // pred_fallthru
          _
        // Predicated region
        $region77: #{tpu_custom_call.1} parent=51 // pred_check
          %p386 = pneg %p171
        $region78: #{tpu_custom_call.1} parent=51 // pred_check_branch
          %388 = sbr.rel (%p386) target = $region80
        $region79: #{tpu_custom_call.1} parent=51 // pred_region
          %389 = dma.done [#allocation12], 8192
        $region80: #{tpu_custom_call.1} parent=51 // pred_fallthru
          _
        %s390 = sand.u32 %s184, 1
        %s391 = scalar_lea.sflag [#allocation15], %s390
        %s392 = sand.u32 %s184, 1
        %s393 = smul.addr %s392, 32
        %s394 = scalar_lea.vmem [#allocation14], %s393
        // Predicated region
        $region81: #{tpu_custom_call.1} parent=51 // pred_check
          %p395 = pneg %p197
        $region82: #{tpu_custom_call.1} parent=51 // pred_check_branch
          %397 = sbr.rel (%p395) target = $region84
        $region83: #{tpu_custom_call.1} parent=51 // pred_region
          %398 = dma.done %s391, 512
        $region84: #{tpu_custom_call.1} parent=51 // pred_fallthru
          _
        %p399 = pneg %p45
        %p400 = pneg %p42
        %p401 = pneg %p66
        %p402 = pneg %p63
        %p403 = pneg %p87
        %p404 = pneg %p84
        %p405 = pneg %p108
        %p406 = pneg %p105
        %p407 = pneg %p129
        %p408 = pneg %p126
        %p409 = pneg %p150
        %p410 = pneg %p147
        %p411 = pneg %p171
        %p412 = pneg %p168
        %s413 = sand.u32 %s184, 1
        %s414 = scalar_lea.sflag [#allocation15], %s413
        %s415 = sand.u32 %s184, 1
        %s416 = smul.addr %s415, 32
        %s417 = scalar_lea.vmem [#allocation14], %s416
        %p418 = pneg %p197
        %p419 = pneg %p194
        %p420 = pneg %p223
        %p421 = pneg %p220
        %s422 = sand.u32 %s210, 1
        %s423 = scalar_lea.sflag [#allocation4], %s422
        %s424 = sand.u32 %s210, 1
        %s425 = smul.addr %s424, 32
        %s426 = scalar_lea.vmem [#allocation16], %s425
        %s427 = smul.u32 2, %s29
        %s428 = smul.u32 2, %s29
        %v429 = vld [vmem:[%s394] sm:$0xff]
        %v430 = vld [vmem:[%s394 + $0x8] sm:$0xff]
        %v431 = vld [vmem:[%s394 + $0x10] sm:$0xff]
        %v432 = vld [vmem:[%s394 + $0x18] sm:$0xff]
        %v433 = vld [vmem:[#allocation2] sm:$0xff]
        %v434 = vld [vmem:[#allocation2 + $0x8] sm:$0xff]
        %v435 = vld [vmem:[#allocation2 + $0x10] sm:$0xff]
        %v436 = vld [vmem:[#allocation2 + $0x18] sm:$0xff]
        %v437 = vld [vmem:[#allocation5] sm:$0xff]
        %v438 = vld [vmem:[#allocation5 + $0x8] sm:$0xff]
        %v439 = vld [vmem:[#allocation5 + $0x10] sm:$0xff]
        %v440 = vld [vmem:[#allocation5 + $0x18] sm:$0xff]
        %v441 = vld [vmem:[#allocation7] sm:$0xff]
        %v442 = vld [vmem:[#allocation7 + $0x8] sm:$0xff]
        %v443 = vld [vmem:[#allocation7 + $0x10] sm:$0xff]
        %v444 = vld [vmem:[#allocation7 + $0x18] sm:$0xff]
        %v445 = vmul.f32 %v429, %v433
        %v446 = vmul.f32 %v431, %v435
        %v447 = vmul.f32 %v430, %v434
        %v448 = vmul.f32 %v432, %v436
        %v449 = vsub.f32 %v445, %v447
        %v450 = vsub.f32 %v446, %v448
        %v451 = vsub.f32 %v449, %v437
        %v452 = vsub.f32 %v450, %v439
        %v453 = vmul.f32 %v429, %v434
        %v454 = vmul.f32 %v431, %v436
        %v455 = vmul.f32 %v430, %v433
        %v456 = vmul.f32 %v432, %v435
        %v457 = vadd.f32 %v453, %v455
        %v458 = vadd.f32 %v454, %v456
        %v459 = vsub.f32 %v457, %v438
        %v460 = vsub.f32 %v458, %v440
        %v461 = vld [vmem:[#allocation11] sm:$0xff]
        %v462 = vld [vmem:[#allocation11 + $0x8] sm:$0xff]
        %v463 = vld [vmem:[#allocation11 + $0x10] sm:$0xff]
        %v464 = vld [vmem:[#allocation11 + $0x18] sm:$0xff]
        %v465 = vld [vmem:[#allocation11 + $0x20] sm:$0xff]
        %v466 = vld [vmem:[#allocation11 + $0x28] sm:$0xff]
        %v467 = vld [vmem:[#allocation11 + $0x30] sm:$0xff]
        %v468 = vld [vmem:[#allocation11 + $0x38] sm:$0xff]
        %v469 = vld [vmem:[#allocation11 + $0x40] sm:$0xff]
        %v470 = vld [vmem:[#allocation11 + $0x48] sm:$0xff]
        %v471 = vld [vmem:[#allocation11 + $0x50] sm:$0xff]
        %v472 = vld [vmem:[#allocation11 + $0x58] sm:$0xff]
        %v473 = vld [vmem:[#allocation11 + $0x60] sm:$0xff]
        %v474 = vld [vmem:[#allocation11 + $0x68] sm:$0xff]
        %v475 = vld [vmem:[#allocation11 + $0x70] sm:$0xff]
        %v476 = vld [vmem:[#allocation11 + $0x78] sm:$0xff]
        %v477 = vld [vmem:[#allocation11 + $0x80] sm:$0xff]
        %v478 = vld [vmem:[#allocation11 + $0x88] sm:$0xff]
        %v479 = vld [vmem:[#allocation11 + $0x90] sm:$0xff]
        %v480 = vld [vmem:[#allocation11 + $0x98] sm:$0xff]
        %v481 = vld [vmem:[#allocation11 + $0xa0] sm:$0xff]
        %v482 = vld [vmem:[#allocation11 + $0xa8] sm:$0xff]
        %v483 = vld [vmem:[#allocation11 + $0xb0] sm:$0xff]
        %v484 = vld [vmem:[#allocation11 + $0xb8] sm:$0xff]
        %v485 = vld [vmem:[#allocation11 + $0xc0] sm:$0xff]
        %v486 = vld [vmem:[#allocation11 + $0xc8] sm:$0xff]
        %v487 = vld [vmem:[#allocation11 + $0xd0] sm:$0xff]
        %v488 = vld [vmem:[#allocation11 + $0xd8] sm:$0xff]
        %v489 = vld [vmem:[#allocation11 + $0xe0] sm:$0xff]
        %v490 = vld [vmem:[#allocation11 + $0xe8] sm:$0xff]
        %v491 = vld [vmem:[#allocation11 + $0xf0] sm:$0xff]
        %v492 = vld [vmem:[#allocation11 + $0xf8] sm:$0xff]
        %v493 = vld [vmem:[#allocation11 + $0x100] sm:$0xff]
        %v494 = vld [vmem:[#allocation11 + $0x108] sm:$0xff]
        %v495 = vld [vmem:[#allocation11 + $0x110] sm:$0xff]
        %v496 = vld [vmem:[#allocation11 + $0x118] sm:$0xff]
        %v497 = vld [vmem:[#allocation11 + $0x120] sm:$0xff]
        %v498 = vld [vmem:[#allocation11 + $0x128] sm:$0xff]
        %v499 = vld [vmem:[#allocation11 + $0x130] sm:$0xff]
        %v500 = vld [vmem:[#allocation11 + $0x138] sm:$0xff]
        %v501 = vld [vmem:[#allocation11 + $0x140] sm:$0xff]
        %v502 = vld [vmem:[#allocation11 + $0x148] sm:$0xff]
        %v503 = vld [vmem:[#allocation11 + $0x150] sm:$0xff]
        %v504 = vld [vmem:[#allocation11 + $0x158] sm:$0xff]
        %v505 = vld [vmem:[#allocation11 + $0x160] sm:$0xff]
        %v506 = vld [vmem:[#allocation11 + $0x168] sm:$0xff]
        %v507 = vld [vmem:[#allocation11 + $0x170] sm:$0xff]
        %v508 = vld [vmem:[#allocation11 + $0x178] sm:$0xff]
        %v509 = vld [vmem:[#allocation11 + $0x180] sm:$0xff]
        %v510 = vld [vmem:[#allocation11 + $0x188] sm:$0xff]
        %v511 = vld [vmem:[#allocation11 + $0x190] sm:$0xff]
        %v512 = vld [vmem:[#allocation11 + $0x198] sm:$0xff]
        %v513 = vld [vmem:[#allocation11 + $0x1a0] sm:$0xff]
        %v514 = vld [vmem:[#allocation11 + $0x1a8] sm:$0xff]
        %v515 = vld [vmem:[#allocation11 + $0x1b0] sm:$0xff]
        %v516 = vld [vmem:[#allocation11 + $0x1b8] sm:$0xff]
        %v517 = vld [vmem:[#allocation11 + $0x1c0] sm:$0xff]
        %v518 = vld [vmem:[#allocation11 + $0x1c8] sm:$0xff]
        %v519 = vld [vmem:[#allocation11 + $0x1d0] sm:$0xff]
        %v520 = vld [vmem:[#allocation11 + $0x1d8] sm:$0xff]
        %v521 = vld [vmem:[#allocation11 + $0x1e0] sm:$0xff]
        %v522 = vld [vmem:[#allocation11 + $0x1e8] sm:$0xff]
        %v523 = vld [vmem:[#allocation11 + $0x1f0] sm:$0xff]
        %v524 = vld [vmem:[#allocation11 + $0x1f8] sm:$0xff]
        %525 = vmatprep.subr.mxu0 %v462
        %526 = vmatpush1.msra.mxu0 %v461
        %527 = vmatprep.subr.mxu0 %v464
        %528 = vmatpush1.msra.mxu0 %v463
        %529 = vmatprep.subr.mxu0 %v466
        %530 = vmatpush1.msra.mxu0 %v465
        %531 = vmatprep.subr.mxu0 %v468
        %532 = vmatpush1.msra.mxu0 %v467
        %533 = vmatprep.subr.mxu0 %v470
        %534 = vmatpush1.msra.mxu0 %v469
        %535 = vmatprep.subr.mxu0 %v472
        %536 = vmatpush1.msra.mxu0 %v471
        %537 = vmatprep.subr.mxu0 %v474
        %538 = vmatpush1.msra.mxu0 %v473
        %539 = vmatprep.subr.mxu0 %v476
        %540 = vmatpush1.msra.mxu0 %v475
        %541 = vmatprep.subr.mxu0 %v478
        %542 = vmatpush1.msra.mxu0 %v477
        %543 = vmatprep.subr.mxu0 %v480
        %544 = vmatpush1.msra.mxu0 %v479
        %545 = vmatprep.subr.mxu0 %v482
        %546 = vmatpush1.msra.mxu0 %v481
        %547 = vmatprep.subr.mxu0 %v484
        %548 = vmatpush1.msra.mxu0 %v483
        %549 = vmatprep.subr.mxu0 %v486
        %550 = vmatpush1.msra.mxu0 %v485
        %551 = vmatprep.subr.mxu0 %v488
        %552 = vmatpush1.msra.mxu0 %v487
        %553 = vmatprep.subr.mxu0 %v490
        %554 = vmatpush1.msra.mxu0 %v489
        %555 = vmatprep.subr.mxu0 %v492
        %556 = vmatpush1.msra.mxu0 %v491
        %557 = vmatprep.subr.mxu0 %v494
        %558 = vmatpush1.msra.mxu0 %v493
        %559 = vmatprep.subr.mxu0 %v496
        %560 = vmatpush1.msra.mxu0 %v495
        %561 = vmatprep.subr.mxu0 %v498
        %562 = vmatpush1.msra.mxu0 %v497
        %563 = vmatprep.subr.mxu0 %v500
        %564 = vmatpush1.msra.mxu0 %v499
        %565 = vmatprep.subr.mxu0 %v502
        %566 = vmatpush1.msra.mxu0 %v501
        %567 = vmatprep.subr.mxu0 %v504
        %568 = vmatpush1.msra.mxu0 %v503
        %569 = vmatprep.subr.mxu0 %v506
        %570 = vmatpush1.msra.mxu0 %v505
        %571 = vmatprep.subr.mxu0 %v508
        %572 = vmatpush1.msra.mxu0 %v507
        %573 = vmatprep.subr.mxu0 %v510
        %574 = vmatpush1.msra.mxu0 %v509
        %575 = vmatprep.subr.mxu0 %v512
        %576 = vmatpush1.msra.mxu0 %v511
        %577 = vmatprep.subr.mxu0 %v514
        %578 = vmatpush1.msra.mxu0 %v513
        %579 = vmatprep.subr.mxu0 %v516
        %580 = vmatpush1.msra.mxu0 %v515
        %581 = vmatprep.subr.mxu0 %v518
        %582 = vmatpush1.msra.mxu0 %v517
        %583 = vmatprep.subr.mxu0 %v520
        %584 = vmatpush1.msra.mxu0 %v519
        %585 = vmatprep.subr.mxu0 %v522
        %586 = vmatpush1.msra.mxu0 %v521
        %587 = vmatprep.subr.mxu0 %v524
        %588 = vmatpush1.msra.mxu0 %v523
        %589 = vmatprep.mubr.f32.mxu0 %v459
        %590 = vmatmul.mubr.f32.gmra.mrb[0].mxu0 %v451
        %v591 = vpop.f32.mrb[0].mxu0
        %v592 = vadd.f32 0.0, %v591
        %v593 = vpop.f32.mrb[0].mxu0
        %v594 = vadd.f32 0.0, %v593
        %595 = vmatprep.mubr.f32.mxu0 %v460
        %596 = vmatmul.mubr.f32.gmra.mrb[0].mxu0 %v452
        %v597 = vpop.f32.mrb[0].mxu0
        %v598 = vadd.f32 0.0, %v597
        %v599 = vpop.f32.mrb[0].mxu0
        %v600 = vadd.f32 0.0, %v599
        %601 = vdwg.mxu0
        %v602 = vld [vmem:[#allocation8] sm:$0xff]
        %v603 = vld [vmem:[#allocation8 + $0x8] sm:$0xff]
        %v604 = vld [vmem:[#allocation8 + $0x10] sm:$0xff]
        %v605 = vld [vmem:[#allocation8 + $0x18] sm:$0xff]
        %vm606 = vcmask 261120
        %v608 = vsel %vm606, %v602, 0
        %v611 = vsel %vm606, %v603, 0
        %v614 = vsel %vm606, %v604, 0
        %v617 = vsel %vm606, %v605, 0
        %619 = vmatprep.subr.mxu0 0.0
        %620 = vmatpush1.msra.mxu0 %v592
        %621 = vmatprep.subr.mxu0 0.0
        %622 = vmatpush1.msra.mxu0 %v598
        %623 = vmatprep.subr.mxu0 0.0
        %624 = vmatpush1.msra.mxu0 %v594
        %625 = vmatprep.subr.mxu0 0.0
        %626 = vmatpush1.msra.mxu0 %v600
        %627 = vmatprep.subr.mxu0 0.0
        %628 = vmatpush1.msra.mxu0 0.0
        %629 = vmatprep.subr.mxu0 0.0
        %630 = vmatpush1.msra.mxu0 0.0
        %631 = vmatprep.subr.mxu0 0.0
        %632 = vmatpush1.msra.mxu0 0.0
        %633 = vmatprep.subr.mxu0 0.0
        %634 = vmatpush1.msra.mxu0 0.0
        %635 = vmatprep.subr.mxu0 0.0
        %636 = vmatpush1.msra.mxu0 0.0
        %637 = vmatprep.subr.mxu0 0.0
        %638 = vmatpush1.msra.mxu0 0.0
        %639 = vmatprep.subr.mxu0 0.0
        %640 = vmatpush1.msra.mxu0 0.0
        %641 = vmatprep.subr.mxu0 0.0
        %642 = vmatpush1.msra.mxu0 0.0
        %643 = vmatprep.subr.mxu0 0.0
        %644 = vmatpush1.msra.mxu0 0.0
        %645 = vmatprep.subr.mxu0 0.0
        %646 = vmatpush1.msra.mxu0 0.0
        %647 = vmatprep.subr.mxu0 0.0
        %648 = vmatpush1.msra.mxu0 0.0
        %649 = vmatprep.subr.mxu0 0.0
        %650 = vmatpush1.msra.mxu0 0.0
        %651 = vmatprep.subr.mxu0 0.0
        %652 = vmatpush1.msra.mxu0 0.0
        %653 = vmatprep.subr.mxu0 0.0
        %654 = vmatpush1.msra.mxu0 0.0
        %655 = vmatprep.subr.mxu0 0.0
        %656 = vmatpush1.msra.mxu0 0.0
        %657 = vmatprep.subr.mxu0 0.0
        %658 = vmatpush1.msra.mxu0 0.0
        %659 = vmatprep.subr.mxu0 0.0
        %660 = vmatpush1.msra.mxu0 0.0
        %661 = vmatprep.subr.mxu0 0.0
        %662 = vmatpush1.msra.mxu0 0.0
        %663 = vmatprep.subr.mxu0 0.0
        %664 = vmatpush1.msra.mxu0 0.0
        %665 = vmatprep.subr.mxu0 0.0
        %666 = vmatpush1.msra.mxu0 0.0
        %667 = vmatprep.subr.mxu0 0.0
        %668 = vmatpush1.msra.mxu0 0.0
        %669 = vmatprep.subr.mxu0 0.0
        %670 = vmatpush1.msra.mxu0 0.0
        %671 = vmatprep.subr.mxu0 0.0
        %672 = vmatpush1.msra.mxu0 0.0
        %673 = vmatprep.subr.mxu0 0.0
        %674 = vmatpush1.msra.mxu0 0.0
        %675 = vmatprep.subr.mxu0 0.0
        %676 = vmatpush1.msra.mxu0 0.0
        %677 = vmatprep.subr.mxu0 0.0
        %678 = vmatpush1.msra.mxu0 0.0
        %679 = vmatprep.subr.mxu0 0.0
        %680 = vmatpush1.msra.mxu0 0.0
        %681 = vmatprep.subr.mxu0 0.0
        %682 = vmatpush1.msra.mxu0 0.0
        %683 = vmatprep.mubr.f32.mxu0 0.0
        %684 = vmatmul.mubr.f32.gmra.mrb[0].mxu0 %v608
        %v685 = vpop.f32.mrb[0].mxu0
        %v686 = vadd.f32 0.0, %v685
        %v687 = vpop.f32.mrb[0].mxu0
        %688 = vmatprep.mubr.f32.mxu0 0.0
        %689 = vmatmul.mubr.f32.gmra.mrb[0].mxu0 %v611
        %v690 = vpop.f32.mrb[0].mxu0
        %v691 = vadd.f32 0.0, %v690
        %v692 = vpop.f32.mrb[0].mxu0
        %693 = vmatprep.mubr.f32.mxu0 0.0
        %694 = vmatmul.mubr.f32.gmra.mrb[0].mxu0 %v614
        %v695 = vpop.f32.mrb[0].mxu0
        %v696 = vadd.f32 0.0, %v695
        %v697 = vpop.f32.mrb[0].mxu0
        %698 = vmatprep.mubr.f32.mxu0 0.0
        %699 = vmatmul.mubr.f32.gmra.mrb[0].mxu0 %v617
        %v700 = vpop.f32.mrb[0].mxu0
        %v701 = vadd.f32 0.0, %v700
        %v702 = vpop.f32.mrb[0].mxu0
        %703 = vdwg.mxu0
        %v704 = vmul.f32 %v686, %v441
        %v705 = vmul.f32 %v691, %v443
        %v706 = vmul.f32 %v696, %v442
        %v707 = vmul.f32 %v701, %v444
        %v708 = vsub.f32 %v704, %v706
        %v709 = vsub.f32 %v705, %v707
        %v710 = vmul.f32 %v686, %v442
        %v711 = vmul.f32 %v691, %v444
        %v712 = vmul.f32 %v696, %v441
        %v713 = vmul.f32 %v701, %v443
        %v714 = vadd.f32 %v710, %v712
        %v715 = vadd.f32 %v711, %v713
        %v716 = vld [vmem:[#allocation10] sm:$0xff]
        %v717 = vld [vmem:[#allocation10 + $0x8] sm:$0xff]
        %v718 = vld [vmem:[#allocation10 + $0x10] sm:$0xff]
        %v719 = vld [vmem:[#allocation10 + $0x18] sm:$0xff]
        %v721 = vsel %vm606, %v716, 0
        %v724 = vsel %vm606, %v717, 0
        %v727 = vsel %vm606, %v718, 0
        %v730 = vsel %vm606, %v719, 0
        %732 = vmatprep.subr.mxu0 0.0
        %733 = vmatpush1.msra.mxu0 %v708
        %734 = vmatprep.subr.mxu0 0.0
        %735 = vmatpush1.msra.mxu0 %v709
        %736 = vmatprep.subr.mxu0 0.0
        %737 = vmatpush1.msra.mxu0 %v714
        %738 = vmatprep.subr.mxu0 0.0
        %739 = vmatpush1.msra.mxu0 %v715
        %740 = vmatprep.subr.mxu0 0.0
        %741 = vmatpush1.msra.mxu0 0.0
        %742 = vmatprep.subr.mxu0 0.0
        %743 = vmatpush1.msra.mxu0 0.0
        %744 = vmatprep.subr.mxu0 0.0
        %745 = vmatpush1.msra.mxu0 0.0
        %746 = vmatprep.subr.mxu0 0.0
        %747 = vmatpush1.msra.mxu0 0.0
        %748 = vmatprep.subr.mxu0 0.0
        %749 = vmatpush1.msra.mxu0 0.0
        %750 = vmatprep.subr.mxu0 0.0
        %751 = vmatpush1.msra.mxu0 0.0
        %752 = vmatprep.subr.mxu0 0.0
        %753 = vmatpush1.msra.mxu0 0.0
        %754 = vmatprep.subr.mxu0 0.0
        %755 = vmatpush1.msra.mxu0 0.0
        %756 = vmatprep.subr.mxu0 0.0
        %757 = vmatpush1.msra.mxu0 0.0
        %758 = vmatprep.subr.mxu0 0.0
        %759 = vmatpush1.msra.mxu0 0.0
        %760 = vmatprep.subr.mxu0 0.0
        %761 = vmatpush1.msra.mxu0 0.0
        %762 = vmatprep.subr.mxu0 0.0
        %763 = vmatpush1.msra.mxu0 0.0
        %764 = vmatprep.subr.mxu0 0.0
        %765 = vmatpush1.msra.mxu0 0.0
        %766 = vmatprep.subr.mxu0 0.0
        %767 = vmatpush1.msra.mxu0 0.0
        %768 = vmatprep.subr.mxu0 0.0
        %769 = vmatpush1.msra.mxu0 0.0
        %770 = vmatprep.subr.mxu0 0.0
        %771 = vmatpush1.msra.mxu0 0.0
        %772 = vmatprep.subr.mxu0 0.0
        %773 = vmatpush1.msra.mxu0 0.0
        %774 = vmatprep.subr.mxu0 0.0
        %775 = vmatpush1.msra.mxu0 0.0
        %776 = vmatprep.subr.mxu0 0.0
        %777 = vmatpush1.msra.mxu0 0.0
        %778 = vmatprep.subr.mxu0 0.0
        %779 = vmatpush1.msra.mxu0 0.0
        %780 = vmatprep.subr.mxu0 0.0
        %781 = vmatpush1.msra.mxu0 0.0
        %782 = vmatprep.subr.mxu0 0.0
        %783 = vmatpush1.msra.mxu0 0.0
        %784 = vmatprep.subr.mxu0 0.0
        %785 = vmatpush1.msra.mxu0 0.0
        %786 = vmatprep.subr.mxu0 0.0
        %787 = vmatpush1.msra.mxu0 0.0
        %788 = vmatprep.subr.mxu0 0.0
        %789 = vmatpush1.msra.mxu0 0.0
        %790 = vmatprep.subr.mxu0 0.0
        %791 = vmatpush1.msra.mxu0 0.0
        %792 = vmatprep.subr.mxu0 0.0
        %793 = vmatpush1.msra.mxu0 0.0
        %794 = vmatprep.subr.mxu0 0.0
        %795 = vmatpush1.msra.mxu0 0.0
        %796 = vmatprep.mubr.f32.mxu0 0.0
        %797 = vmatmul.mubr.f32.gmra.mrb[0].mxu0 %v721
        %v798 = vpop.f32.mrb[0].mxu0
        %v799 = vadd.f32 0.0, %v798
        %v800 = vpop.f32.mrb[0].mxu0
        %801 = vmatprep.mubr.f32.mxu0 0.0
        %802 = vmatmul.mubr.f32.gmra.mrb[0].mxu0 %v724
        %v803 = vpop.f32.mrb[0].mxu0
        %v804 = vadd.f32 0.0, %v803
        %v805 = vpop.f32.mrb[0].mxu0
        %806 = vmatprep.mubr.f32.mxu0 0.0
        %807 = vmatmul.mubr.f32.gmra.mrb[0].mxu0 %v727
        %v808 = vpop.f32.mrb[0].mxu0
        %v809 = vadd.f32 0.0, %v808
        %v810 = vpop.f32.mrb[0].mxu0
        %811 = vmatprep.mubr.f32.mxu0 0.0
        %812 = vmatmul.mubr.f32.gmra.mrb[0].mxu0 %v730
        %v813 = vpop.f32.mrb[0].mxu0
        %v814 = vadd.f32 0.0, %v813
        %v815 = vpop.f32.mrb[0].mxu0
        %816 = vdwg.mxu0
        %v817 = vld [vmem:[#allocation13] sm:$0xff]
        %v818 = vld [vmem:[#allocation13 + $0x8] sm:$0xff]
        %v819 = vld [vmem:[#allocation13 + $0x10] sm:$0xff]
        %v820 = vld [vmem:[#allocation13 + $0x18] sm:$0xff]
        %v821 = vld [vmem:[#allocation13 + $0x20] sm:$0xff]
        %v822 = vld [vmem:[#allocation13 + $0x28] sm:$0xff]
        %v823 = vld [vmem:[#allocation13 + $0x30] sm:$0xff]
        %v824 = vld [vmem:[#allocation13 + $0x38] sm:$0xff]
        %v825 = vld [vmem:[#allocation13 + $0x40] sm:$0xff]
        %v826 = vld [vmem:[#allocation13 + $0x48] sm:$0xff]
        %v827 = vld [vmem:[#allocation13 + $0x50] sm:$0xff]
        %v828 = vld [vmem:[#allocation13 + $0x58] sm:$0xff]
        %v829 = vld [vmem:[#allocation13 + $0x60] sm:$0xff]
        %v830 = vld [vmem:[#allocation13 + $0x68] sm:$0xff]
        %v831 = vld [vmem:[#allocation13 + $0x70] sm:$0xff]
        %v832 = vld [vmem:[#allocation13 + $0x78] sm:$0xff]
        %v833 = vld [vmem:[#allocation13 + $0x80] sm:$0xff]
        %v834 = vld [vmem:[#allocation13 + $0x88] sm:$0xff]
        %v835 = vld [vmem:[#allocation13 + $0x90] sm:$0xff]
        %v836 = vld [vmem:[#allocation13 + $0x98] sm:$0xff]
        %v837 = vld [vmem:[#allocation13 + $0xa0] sm:$0xff]
        %v838 = vld [vmem:[#allocation13 + $0xa8] sm:$0xff]
        %v839 = vld [vmem:[#allocation13 + $0xb0] sm:$0xff]
        %v840 = vld [vmem:[#allocation13 + $0xb8] sm:$0xff]
        %v841 = vld [vmem:[#allocation13 + $0xc0] sm:$0xff]
        %v842 = vld [vmem:[#allocation13 + $0xc8] sm:$0xff]
        %v843 = vld [vmem:[#allocation13 + $0xd0] sm:$0xff]
        %v844 = vld [vmem:[#allocation13 + $0xd8] sm:$0xff]
        %v845 = vld [vmem:[#allocation13 + $0xe0] sm:$0xff]
        %v846 = vld [vmem:[#allocation13 + $0xe8] sm:$0xff]
        %v847 = vld [vmem:[#allocation13 + $0xf0] sm:$0xff]
        %v848 = vld [vmem:[#allocation13 + $0xf8] sm:$0xff]
        %v849 = vld [vmem:[#allocation13 + $0x100] sm:$0xff]
        %v850 = vld [vmem:[#allocation13 + $0x108] sm:$0xff]
        %v851 = vld [vmem:[#allocation13 + $0x110] sm:$0xff]
        %v852 = vld [vmem:[#allocation13 + $0x118] sm:$0xff]
        %v853 = vld [vmem:[#allocation13 + $0x120] sm:$0xff]
        %v854 = vld [vmem:[#allocation13 + $0x128] sm:$0xff]
        %v855 = vld [vmem:[#allocation13 + $0x130] sm:$0xff]
        %v856 = vld [vmem:[#allocation13 + $0x138] sm:$0xff]
        %v857 = vld [vmem:[#allocation13 + $0x140] sm:$0xff]
        %v858 = vld [vmem:[#allocation13 + $0x148] sm:$0xff]
        %v859 = vld [vmem:[#allocation13 + $0x150] sm:$0xff]
        %v860 = vld [vmem:[#allocation13 + $0x158] sm:$0xff]
        %v861 = vld [vmem:[#allocation13 + $0x160] sm:$0xff]
        %v862 = vld [vmem:[#allocation13 + $0x168] sm:$0xff]
        %v863 = vld [vmem:[#allocation13 + $0x170] sm:$0xff]
        %v864 = vld [vmem:[#allocation13 + $0x178] sm:$0xff]
        %v865 = vld [vmem:[#allocation13 + $0x180] sm:$0xff]
        %v866 = vld [vmem:[#allocation13 + $0x188] sm:$0xff]
        %v867 = vld [vmem:[#allocation13 + $0x190] sm:$0xff]
        %v868 = vld [vmem:[#allocation13 + $0x198] sm:$0xff]
        %v869 = vld [vmem:[#allocation13 + $0x1a0] sm:$0xff]
        %v870 = vld [vmem:[#allocation13 + $0x1a8] sm:$0xff]
        %v871 = vld [vmem:[#allocation13 + $0x1b0] sm:$0xff]
        %v872 = vld [vmem:[#allocation13 + $0x1b8] sm:$0xff]
        %v873 = vld [vmem:[#allocation13 + $0x1c0] sm:$0xff]
        %v874 = vld [vmem:[#allocation13 + $0x1c8] sm:$0xff]
        %v875 = vld [vmem:[#allocation13 + $0x1d0] sm:$0xff]
        %v876 = vld [vmem:[#allocation13 + $0x1d8] sm:$0xff]
        %v877 = vld [vmem:[#allocation13 + $0x1e0] sm:$0xff]
        %v878 = vld [vmem:[#allocation13 + $0x1e8] sm:$0xff]
        %v879 = vld [vmem:[#allocation13 + $0x1f0] sm:$0xff]
        %v880 = vld [vmem:[#allocation13 + $0x1f8] sm:$0xff]
        %881 = vmatprep.subr.mxu0 %v818
        %882 = vmatpush1.msra.mxu0 %v817
        %883 = vmatprep.subr.mxu0 %v820
        %884 = vmatpush1.msra.mxu0 %v819
        %885 = vmatprep.subr.mxu0 %v822
        %886 = vmatpush1.msra.mxu0 %v821
        %887 = vmatprep.subr.mxu0 %v824
        %888 = vmatpush1.msra.mxu0 %v823
        %889 = vmatprep.subr.mxu0 %v826
        %890 = vmatpush1.msra.mxu0 %v825
        %891 = vmatprep.subr.mxu0 %v828
        %892 = vmatpush1.msra.mxu0 %v827
        %893 = vmatprep.subr.mxu0 %v830
        %894 = vmatpush1.msra.mxu0 %v829
        %895 = vmatprep.subr.mxu0 %v832
        %896 = vmatpush1.msra.mxu0 %v831
        %897 = vmatprep.subr.mxu0 %v834
        %898 = vmatpush1.msra.mxu0 %v833
        %899 = vmatprep.subr.mxu0 %v836
        %900 = vmatpush1.msra.mxu0 %v835
        %901 = vmatprep.subr.mxu0 %v838
        %902 = vmatpush1.msra.mxu0 %v837
        %903 = vmatprep.subr.mxu0 %v840
        %904 = vmatpush1.msra.mxu0 %v839
        %905 = vmatprep.subr.mxu0 %v842
        %906 = vmatpush1.msra.mxu0 %v841
        %907 = vmatprep.subr.mxu0 %v844
        %908 = vmatpush1.msra.mxu0 %v843
        %909 = vmatprep.subr.mxu0 %v846
        %910 = vmatpush1.msra.mxu0 %v845
        %911 = vmatprep.subr.mxu0 %v848
        %912 = vmatpush1.msra.mxu0 %v847
        %913 = vmatprep.subr.mxu0 %v850
        %914 = vmatpush1.msra.mxu0 %v849
        %915 = vmatprep.subr.mxu0 %v852
        %916 = vmatpush1.msra.mxu0 %v851
        %917 = vmatprep.subr.mxu0 %v854
        %918 = vmatpush1.msra.mxu0 %v853
        %919 = vmatprep.subr.mxu0 %v856
        %920 = vmatpush1.msra.mxu0 %v855
        %921 = vmatprep.subr.mxu0 %v858
        %922 = vmatpush1.msra.mxu0 %v857
        %923 = vmatprep.subr.mxu0 %v860
        %924 = vmatpush1.msra.mxu0 %v859
        %925 = vmatprep.subr.mxu0 %v862
        %926 = vmatpush1.msra.mxu0 %v861
        %927 = vmatprep.subr.mxu0 %v864
        %928 = vmatpush1.msra.mxu0 %v863
        %929 = vmatprep.subr.mxu0 %v866
        %930 = vmatpush1.msra.mxu0 %v865
        %931 = vmatprep.subr.mxu0 %v868
        %932 = vmatpush1.msra.mxu0 %v867
        %933 = vmatprep.subr.mxu0 %v870
        %934 = vmatpush1.msra.mxu0 %v869
        %935 = vmatprep.subr.mxu0 %v872
        %936 = vmatpush1.msra.mxu0 %v871
        %937 = vmatprep.subr.mxu0 %v874
        %938 = vmatpush1.msra.mxu0 %v873
        %939 = vmatprep.subr.mxu0 %v876
        %940 = vmatpush1.msra.mxu0 %v875
        %941 = vmatprep.subr.mxu0 %v878
        %942 = vmatpush1.msra.mxu0 %v877
        %943 = vmatprep.subr.mxu0 %v880
        %944 = vmatpush1.msra.mxu0 %v879
        %945 = vmatprep.mubr.f32.mxu0 %v809
        %946 = vmatmul.mubr.f32.gmra.mrb[0].mxu0 %v799
        %v947 = vpop.f32.mrb[0].mxu0
        %v948 = vadd.f32 0.0, %v947
        %v949 = vpop.f32.mrb[0].mxu0
        %v950 = vadd.f32 0.0, %v949
        %951 = vmatprep.mubr.f32.mxu0 %v814
        %952 = vmatmul.mubr.f32.gmra.mrb[0].mxu0 %v804
        %v953 = vpop.f32.mrb[0].mxu0
        %v954 = vadd.f32 0.0, %v953
        %v955 = vpop.f32.mrb[0].mxu0
        %v956 = vadd.f32 0.0, %v955
        %957 = vdwg.mxu0
        %958 = vst [vmem:[%s426] sm:$0xff] %v948
        %959 = vst [vmem:[%s426 + $0x8] sm:$0xff] %v950
        %960 = vst [vmem:[%s426 + $0x10] sm:$0xff] %v954
        %961 = vst [vmem:[%s426 + $0x18] sm:$0xff] %v956
        %s962 = sand.u32 %s210, 1
        %s963 = scalar_lea.sflag [#allocation4], %s962
        %s964 = sand.u32 %s210, 1
        %s965 = smul.addr %s964, 32
        %s966 = scalar_lea.vmem [#allocation16], %s965
        // Predicated region
        $region85: #{tpu_custom_call.1} parent=51 // pred_check
          %p967 = pneg %p220
        $region86: #{tpu_custom_call.1} parent=51 // pred_check_branch
          %969 = sbr.rel (%p967) target = $region88
        $region87: #{tpu_custom_call.1} parent=51 // pred_region
          %s970 = smul.u32 2, %s29
          %s972 = ssub.s32 512, 512
          %973 = vsyncadd %s963, %s972
          %s974 = smul.addr %s970, 2
          %s975 = smul.addr %s974, 128
          %s976 = scalar_lea.hbm %s8, %s975
          %s977 = sshll.u32 %s966, 4
          %s978 = int_to_ptr.vmem [resolvable:$true] %s977
          %983 = dma.vmem_to_hbm [thread:$0]  %s978, 512, %s976, %s963, 256, 256, 16
        $region88: #{tpu_custom_call.1} parent=51 // pred_fallthru
          _
      $region52: #{tpu_custom_call.1} parent=5 // pred_fallthru
        _
      %p984 = scmp.le.s32.totalorder 2, %s24
      // Predicated region
      $region89: #{tpu_custom_call.1} parent=5 // pred_check
        %p985 = pneg %p984
      $region90: #{tpu_custom_call.1} parent=5 // pred_check_branch
        %987 = sbr.rel (%p985) target = $region92
      $region91: #{tpu_custom_call.1} parent=5 // pred_region
        %s988 = ssub.s32 %s24, 2
        // Predicated region
        $region93: #{tpu_custom_call.1} parent=91 // pred_check
          %p989 = pneg %p226
        $region94: #{tpu_custom_call.1} parent=91 // pred_check_branch
          %991 = sbr.rel (%p989) target = $region96
        $region95: #{tpu_custom_call.1} parent=91 // pred_region
          %s992 = sand.u32 %s211, 1
          %s993 = scalar_lea.sflag [#allocation4], %s992
          %s994 = sand.u32 %s211, 1
          %s995 = smul.addr %s994, 32
          %s996 = scalar_lea.vmem [#allocation16], %s995
          %997 = dma.done %s993, 512
        $region96: #{tpu_custom_call.1} parent=91 // pred_fallthru
          _
      $region92: #{tpu_custom_call.1} parent=5 // pred_fallthru
        _
    $region6: #{tpu_custom_call.1} parent=1 // loop_footer
      %s28 = sadd.s32 1, %s24
    $region7: #{tpu_custom_call.1} parent=1 // loop_footer_branch
      %23 = sbr.rel target = $region3
    $region8: #{tpu_custom_call.1} parent=1 // loop_exit
      _
    %998 = vsyncpa [#allocation3], 1
    %s999 = scalar_lea.sflag [#allocation3], 1
    %1000 = vsyncpa %s999, 1
    %1001 = vsyncpa [#allocation6], 1
    %1002 = vsyncpa [#allocation9], 1
    %1003 = vsyncpa [#allocation12], 1
    %1004 = vsyncpa [#allocation15], 1
    %s1005 = scalar_lea.sflag [#allocation15], 1
    %1006 = vsyncpa %s1005, 1
    %1007 = vsyncpa [#allocation4], 1
    %s1008 = scalar_lea.sflag [#allocation4], 1
    %1009 = vsyncpa %s1008, 1

// kernel: tpu_custom_call.1
$region0: #{tpu_custom_call.1}
  #allocation0 [shape = 'u32[]', space=smem, size = 0x4, offset = 0x4, fixed_abs, tag = 'smem constant byte address 0x4 - core index']
  #allocation1 [shape = 'u32[144,128]{1,0:T(1,128)}', space=vmem, size = 0x12000, scoped, tag = 'internal scratch']
  %s0 = inlined_call_operand.hbm [shape: f32[16,256], index: 0, kind: input, shape index: {}]
  %s1 = inlined_call_operand.hbm [shape: f32[16,256], index: 1, kind: input, shape index: {}]
  %s2 = inlined_call_operand.hbm [shape: f32[16,256], index: 2, kind: input, shape index: {}]
  %s3 = inlined_call_operand.hbm [shape: f32[32,32], index: 3, kind: input, shape index: {}]
  %s4 = inlined_call_operand.hbm [shape: f32[32,32], index: 4, kind: input, shape index: {}]
  %s5 = inlined_call_operand.hbm [shape: f32[256,256], index: 5, kind: input, shape index: {}]
  %s6 = inlined_call_operand.hbm [shape: f32[256,256], index: 6, kind: input, shape index: {}]
  %s7 = inlined_call_operand.hbm [shape: f32[32,256], index: 7, kind: input, shape index: {}]
  %s8 = inlined_call_operand.hbm [shape: f32[32,256], index: 8, kind: output, shape index: {}]
  %s9 = sld [smem:[#allocation0]]
  $region97: #{tpu_custom_call.1} parent=0
    _
  %s11 = ssub.s32 1, %s9
  %s12 = scalar_select 0, %s11, %s9
  $region1: #{tpu_custom_call.1} parent=0
    #allocation2 [shape = 'u8[16384]{0}', space=vmem, size = 0x4000, scoped, tag = 'input window, operand 0, single buffered']
    #allocation3 [shape = 's32[2]{0}', space=sflag, size = 0x8, scoped, tag = 'scoped memory for tpu_custom_call.1']
    #allocation4 [shape = 's32[2]{0}', space=sflag, size = 0x8, scoped, tag = 'scoped memory for tpu_custom_call.1']
    #allocation5 [shape = 'u8[16384]{0}', space=vmem, size = 0x4000, scoped, tag = 'input window, operand 1, single buffered']
    #allocation6 [shape = 's32[1]{0}', space=sflag, size = 0x4, scoped, tag = 'scoped memory for tpu_custom_call.1']
    #allocation7 [shape = 'u8[16384]{0}', space=vmem, size = 0x4000, scoped, tag = 'input window, operand 2, single buffered']
    #allocation8 [shape = 'u8[16384]{0}', space=vmem, size = 0x4000, scoped, tag = 'input window, operand 3, single buffered']
    #allocation9 [shape = 's32[1]{0}', space=sflag, size = 0x4, scoped, tag = 'scoped memory for tpu_custom_call.1']
    #allocation10 [shape = 'u8[16384]{0}', space=vmem, size = 0x4000, scoped, tag = 'input window, operand 4, single buffered']
    #allocation11 [shape = 'u8[262144]{0}', space=vmem, size = 0x40000, scoped, tag = 'input window, operand 5, single buffered']
    #allocation12 [shape = 's32[1]{0}', space=sflag, size = 0x4, scoped, tag = 'scoped memory for tpu_custom_call.1']
    #allocation13 [shape = 'u8[262144]{0}', space=vmem, size = 0x40000, scoped, tag = 'input window, operand 6, single buffered']
    #allocation14 [shape = 'u8[32768]{0}', space=vmem, size = 0x8000, scoped, tag = 'input window, operand 7']
    #allocation15 [shape = 's32[2]{0}', space=sflag, size = 0x8, scoped, tag = 'scoped memory for tpu_custom_call.1']
    #allocation16 [shape = 'u8[32768]{0}', space=vmem, size = 0x8000, scoped, tag = 'output window, operand 0']
    %13 = vsyncpa [#allocation3], 0
    %14 = vsyncpa [#allocation6], 0
    %15 = vsyncpa [#allocation9], 0
    %16 = vsyncpa [#allocation12], 0
    %17 = vsyncpa [#allocation15], 0
    %s18 = scalar_lea.sflag [#allocation15], 1
    %19 = vsyncpa %s18, 0
    %20 = vsyncpa [#allocation4], 0
    %s21 = scalar_lea.sflag [#allocation4], 1
    %22 = vsyncpa %s21, 0
    loop: start=0, step=1, limit=4
    $region2: #{tpu_custom_call.1} parent=1 // loop_pre_header
      _
    $region3: #{tpu_custom_call.1} parent=1 // loop_header
      %s24 = sphi 0, %s28
      %p25 = scmp.ge.s32.totalorder %s24, 4
      %s32 = sphi 0, %s32
      %s34 = sphi 0, %s32
      %s35 = sphi 0, %s34
      %s49 = sphi 0, %s35
      %s53 = sphi 0, %s53
      %s55 = sphi 0, %s53
      %s56 = sphi 0, %s55
      %s70 = sphi 0, %s56
      %s74 = sphi 0, %s74
      %s76 = sphi 0, %s74
      %s77 = sphi 0, %s76
      %s91 = sphi 0, %s77
      %s95 = sphi 0, %s95
      %s97 = sphi 0, %s95
      %s98 = sphi 0, %s97
      %s112 = sphi 0, %s98
      %s116 = sphi 0, %s116
      %s118 = sphi 0, %s116
      %s119 = sphi 0, %s118
      %s133 = sphi 0, %s119
      %s137 = sphi 0, %s137
      %s139 = sphi 0, %s137
      %s140 = sphi 0, %s139
      %s154 = sphi 0, %s140
      %s158 = sphi 0, %s158
      %s160 = sphi 0, %s158
      %s161 = sphi 0, %s160
      %s175 = sphi 0, %s161
      %s181 = sphi 0, %s183
      %s184 = sphi 0, %s181
      %s185 = sphi 0, %s184
      %s201 = sphi 0, %s185
      %s207 = sphi 0, %s209
      %s210 = sphi 0, %s207
      %s211 = sphi 0, %s210
      %s227 = sphi 0, %s211
    $region4: #{tpu_custom_call.1} parent=1 // loop_header_branch
      %27 = sbr.rel (%p25) target = $region8
    $region5: #{tpu_custom_call.1} parent=1 // loop_body
      %s29 = ssub.s32 %s24, 1
      %s30 = ssub.s32 %s24, 2
      %s31 = sadd.s32 %s24, 1
      %s33 = sadd.s32 %s32, 1
      %p36 = scmp.eq.s32.totalorder %s24, 1
      %p37 = scmp.ne.s32.totalorder %s32, %s34
      %p38 = scmp.eq.s32.totalorder %s24, 0
      %p39 = por %p37, %p38
      %p40 = scmp.ne.s32.totalorder %s32, %s34
      %p41 = scmp.eq.s32.totalorder %s29, 1
      %p42 = por %p40, %p41
      %p43 = scmp.ne.s32.totalorder %s34, %s35
      %p44 = scmp.eq.s32.totalorder %s29, 0
      %p45 = por %p43, %p44
      %p46 = scmp.ne.s32.totalorder %s34, %s35
      %p47 = scmp.eq.s32.totalorder %s30, 1
      %p48 = por %p46, %p47
      %p50 = scmp.ne.s32.totalorder %s35, %s49
      %p51 = scmp.eq.s32.totalorder %s30, 0
      %p52 = por %p50, %p51
      %s54 = sadd.s32 %s53, 1
      %p57 = scmp.eq.s32.totalorder %s24, 1
      %p58 = scmp.ne.s32.totalorder %s53, %s55
      %p59 = scmp.eq.s32.totalorder %s24, 0
      %p60 = por %p58, %p59
      %p61 = scmp.ne.s32.totalorder %s53, %s55
      %p62 = scmp.eq.s32.totalorder %s29, 1
      %p63 = por %p61, %p62
      %p64 = scmp.ne.s32.totalorder %s55, %s56
      %p65 = scmp.eq.s32.totalorder %s29, 0
      %p66 = por %p64, %p65
      %p67 = scmp.ne.s32.totalorder %s55, %s56
      %p68 = scmp.eq.s32.totalorder %s30, 1
      %p69 = por %p67, %p68
      %p71 = scmp.ne.s32.totalorder %s56, %s70
      %p72 = scmp.eq.s32.totalorder %s30, 0
      %p73 = por %p71, %p72
      %s75 = sadd.s32 %s74, 1
      %p78 = scmp.eq.s32.totalorder %s24, 1
      %p79 = scmp.ne.s32.totalorder %s74, %s76
      %p80 = scmp.eq.s32.totalorder %s24, 0
      %p81 = por %p79, %p80
      %p82 = scmp.ne.s32.totalorder %s74, %s76
      %p83 = scmp.eq.s32.totalorder %s29, 1
      %p84 = por %p82, %p83
      %p85 = scmp.ne.s32.totalorder %s76, %s77
      %p86 = scmp.eq.s32.totalorder %s29, 0
      %p87 = por %p85, %p86
      %p88 = scmp.ne.s32.totalorder %s76, %s77
      %p89 = scmp.eq.s32.totalorder %s30, 1
      %p90 = por %p88, %p89
      %p92 = scmp.ne.s32.totalorder %s77, %s91
      %p93 = scmp.eq.s32.totalorder %s30, 0
      %p94 = por %p92, %p93
      %s96 = sadd.s32 %s95, 1
      %p99 = scmp.eq.s32.totalorder %s24, 1
      %p100 = scmp.ne.s32.totalorder %s95, %s97
      %p101 = scmp.eq.s32.totalorder %s24, 0
      %p102 = por %p100, %p101
      %p103 = scmp.ne.s32.totalorder %s95, %s97
      %p104 = scmp.eq.s32.totalorder %s29, 1
      %p105 = por %p103, %p104
      %p106 = scmp.ne.s32.totalorder %s97, %s98
      %p107 = scmp.eq.s32.totalorder %s29, 0
      %p108 = por %p106, %p107
      %p109 = scmp.ne.s32.totalorder %s97, %s98
      %p110 = scmp.eq.s32.totalorder %s30, 1
      %p111 = por %p109, %p110
      %p113 = scmp.ne.s32.totalorder %s98, %s112
      %p114 = scmp.eq.s32.totalorder %s30, 0
      %p115 = por %p113, %p114
      %s117 = sadd.s32 %s116, 1
      %p120 = scmp.eq.s32.totalorder %s24, 1
      %p121 = scmp.ne.s32.totalorder %s116, %s118
      %p122 = scmp.eq.s32.totalorder %s24, 0
      %p123 = por %p121, %p122
      %p124 = scmp.ne.s32.totalorder %s116, %s118
      %p125 = scmp.eq.s32.totalorder %s29, 1
      %p126 = por %p124, %p125
      %p127 = scmp.ne.s32.totalorder %s118, %s119
      %p128 = scmp.eq.s32.totalorder %s29, 0
      %p129 = por %p127, %p128
      %p130 = scmp.ne.s32.totalorder %s118, %s119
      %p131 = scmp.eq.s32.totalorder %s30, 1
      %p132 = por %p130, %p131
      %p134 = scmp.ne.s32.totalorder %s119, %s133
      %p135 = scmp.eq.s32.totalorder %s30, 0
      %p136 = por %p134, %p135
      %s138 = sadd.s32 %s137, 1
      %p141 = scmp.eq.s32.totalorder %s24, 1
      %p142 = scmp.ne.s32.totalorder %s137, %s139
      %p143 = scmp.eq.s32.totalorder %s24, 0
      %p144 = por %p142, %p143
      %p145 = scmp.ne.s32.totalorder %s137, %s139
      %p146 = scmp.eq.s32.totalorder %s29, 1
      %p147 = por %p145, %p146
      %p148 = scmp.ne.s32.totalorder %s139, %s140
      %p149 = scmp.eq.s32.totalorder %s29, 0
      %p150 = por %p148, %p149
      %p151 = scmp.ne.s32.totalorder %s139, %s140
      %p152 = scmp.eq.s32.totalorder %s30, 1
      %p153 = por %p151, %p152
      %p155 = scmp.ne.s32.totalorder %s140, %s154
      %p156 = scmp.eq.s32.totalorder %s30, 0
      %p157 = por %p155, %p156
      %s159 = sadd.s32 %s158, 1
      %p162 = scmp.eq.s32.totalorder %s24, 1
      %p163 = scmp.ne.s32.totalorder %s158, %s160
      %p164 = scmp.eq.s32.totalorder %s24, 0
      %p165 = por %p163, %p164
      %p166 = scmp.ne.s32.totalorder %s158, %s160
      %p167 = scmp.eq.s32.totalorder %s29, 1
      %p168 = por %p166, %p167
      %p169 = scmp.ne.s32.totalorder %s160, %s161
      %p170 = scmp.eq.s32.totalorder %s29, 0
      %p171 = por %p169, %p170
      %p172 = scmp.ne.s32.totalorder %s160, %s161
      %p173 = scmp.eq.s32.totalorder %s30, 1
      %p174 = por %p172, %p173
      %p176 = scmp.ne.s32.totalorder %s161, %s175
      %p177 = scmp.eq.s32.totalorder %s30, 0
      %p178 = por %p176, %p177
      %s179 = ssub.s32 %s24, %s31
      %p180 = scmp.eq.s32.totalorder %s179, 0
      %s182 = sadd.s32 %s181, 1
      %s183 = scalar_select %p180, %s181, %s182
      %p186 = pneg %p180
      %p187 = scmp.eq.s32.totalorder %s24, 1
      %p188 = por %p186, %p187
      %p189 = scmp.ne.s32.totalorder %s181, %s184
      %p190 = scmp.eq.s32.totalorder %s24, 0
      %p191 = por %p189, %p190
      %p192 = scmp.ne.s32.totalorder %s181, %s184
      %p193 = scmp.eq.s32.totalorder %s29, 1
      %p194 = por %p192, %p193
      %p195 = scmp.ne.s32.totalorder %s184, %s185
      %p196 = scmp.eq.s32.totalorder %s29, 0
      %p197 = por %p195, %p196
      %p198 = scmp.ne.s32.totalorder %s184, %s185
      %p199 = scmp.eq.s32.totalorder %s30, 1
      %p200 = por %p198, %p199
      %p202 = scmp.ne.s32.totalorder %s185, %s201
      %p203 = scmp.eq.s32.totalorder %s30, 0
      %p204 = por %p202, %p203
      %s205 = ssub.s32 %s24, %s31
      %p206 = scmp.eq.s32.totalorder %s205, 0
      %s208 = sadd.s32 %s207, 1
      %s209 = scalar_select %p206, %s207, %s208
      %p212 = pneg %p206
      %p213 = scmp.eq.s32.totalorder %s24, 1
      %p214 = por %p212, %p213
      %p215 = scmp.ne.s32.totalorder %s207, %s210
      %p216 = scmp.eq.s32.totalorder %s24, 0
      %p217 = por %p215, %p216
      %p218 = scmp.ne.s32.totalorder %s207, %s210
      %p219 = scmp.eq.s32.totalorder %s29, 1
      %p220 = por %p218, %p219
      %p221 = scmp.ne.s32.totalorder %s210, %s211
      %p222 = scmp.eq.s32.totalorder %s29, 0
      %p223 = por %p221, %p222
      %p224 = scmp.ne.s32.totalorder %s210, %s211
      %p225 = scmp.eq.s32.totalorder %s30, 1
      %p226 = por %p224, %p225
      %p228 = scmp.ne.s32.totalorder %s211, %s227
      %p229 = scmp.eq.s32.totalorder %s30, 0
      %p230 = por %p228, %p229
      %p231 = scmp.le.s32.totalorder 1, %s24
      %p232 = scmp.lt.s32.totalorder %s24, 3
      %p233 = pnand %p231, %p232
      %p234 = pneg %p233
      // Predicated region
      $region9: #{tpu_custom_call.1} parent=5 // pred_check
        _
      $region10: #{tpu_custom_call.1} parent=5 // pred_check_branch
        %236 = sbr.rel (%p233) target = $region12
      $region11: #{tpu_custom_call.1} parent=5 // pred_region
        %s237 = ssub.s32 %s24, 1
        // Predicated region
        $region13: #{tpu_custom_call.1} parent=11 // pred_check
          %p238 = pneg %p45
        $region14: #{tpu_custom_call.1} parent=11 // pred_check_branch
          %240 = sbr.rel (%p238) target = $region16
        $region15: #{tpu_custom_call.1} parent=11 // pred_region
          %s242 = ssub.s32 512, 512
          %243 = vsyncadd [#allocation3], %s242
          %s244 = sshll.u32 [#allocation2], 4
          %s245 = int_to_ptr.vmem [resolvable:$true] %s244
          %250 = dma.hbm_to_vmem [thread:$0]  %s0, 512, %s245, [#allocation3], 256, 256, 16
        $region16: #{tpu_custom_call.1} parent=11 // pred_fallthru
          _
        // Predicated region
        $region17: #{tpu_custom_call.1} parent=11 // pred_check
          %p251 = pneg %p66
        $region18: #{tpu_custom_call.1} parent=11 // pred_check_branch
          %253 = sbr.rel (%p251) target = $region20
        $region19: #{tpu_custom_call.1} parent=11 // pred_region
          %s255 = ssub.s32 512, 512
          %256 = vsyncadd [#allocation6], %s255
          %s257 = sshll.u32 [#allocation5], 4
          %s258 = int_to_ptr.vmem [resolvable:$true] %s257
          %263 = dma.hbm_to_vmem [thread:$0]  %s1, 512, %s258, [#allocation6], 256, 256, 16
        $region20: #{tpu_custom_call.1} parent=11 // pred_fallthru
          _
        // Predicated region
        $region21: #{tpu_custom_call.1} parent=11 // pred_check
          %p264 = pneg %p87
        $region22: #{tpu_custom_call.1} parent=11 // pred_check_branch
          %266 = sbr.rel (%p264) target = $region24
        $region23: #{tpu_custom_call.1} parent=11 // pred_region
          %s268 = ssub.s32 512, 512
          %269 = vsyncadd [#allocation6], %s268
          %s270 = sshll.u32 [#allocation7], 4
          %s271 = int_to_ptr.vmem [resolvable:$true] %s270
          %276 = dma.hbm_to_vmem [thread:$0]  %s2, 512, %s271, [#allocation6], 256, 256, 16
        $region24: #{tpu_custom_call.1} parent=11 // pred_fallthru
          _
        // Predicated region
        $region25: #{tpu_custom_call.1} parent=11 // pred_check
          %p277 = pneg %p108
        $region26: #{tpu_custom_call.1} parent=11 // pred_check_branch
          %279 = sbr.rel (%p277) target = $region28
        $region27: #{tpu_custom_call.1} parent=11 // pred_region
          %s281 = ssub.s32 512, 512
          %282 = vsyncadd [#allocation9], %s281
          %s283 = sshll.u32 [#allocation8], 4
          %s284 = int_to_ptr.vmem [resolvable:$true] %s283
          %289 = dma.hbm_to_vmem [thread:$0]  %s3, 512, %s284, [#allocation9], 128, 128, 8
        $region28: #{tpu_custom_call.1} parent=11 // pred_fallthru
          _
        // Predicated region
        $region29: #{tpu_custom_call.1} parent=11 // pred_check
          %p290 = pneg %p129
        $region30: #{tpu_custom_call.1} parent=11 // pred_check_branch
          %292 = sbr.rel (%p290) target = $region32
        $region31: #{tpu_custom_call.1} parent=11 // pred_region
          %s294 = ssub.s32 512, 512
          %295 = vsyncadd [#allocation9], %s294
          %s296 = sshll.u32 [#allocation10], 4
          %s297 = int_to_ptr.vmem [resolvable:$true] %s296
          %302 = dma.hbm_to_vmem [thread:$0]  %s4, 512, %s297, [#allocation9], 128, 128, 8
        $region32: #{tpu_custom_call.1} parent=11 // pred_fallthru
          _
        // Predicated region
        $region33: #{tpu_custom_call.1} parent=11 // pred_check
          %p303 = pneg %p150
        $region34: #{tpu_custom_call.1} parent=11 // pred_check_branch
          %305 = sbr.rel (%p303) target = $region36
        $region35: #{tpu_custom_call.1} parent=11 // pred_region
          %s307 = ssub.s32 8192, 8192
          %308 = vsyncadd [#allocation12], %s307
          %s309 = sshll.u32 [#allocation11], 4
          %s310 = int_to_ptr.vmem [resolvable:$true] %s309
          %315 = dma.hbm_to_vmem [thread:$0]  %s5, 8192, %s310, [#allocation12], 256, 256, 16
        $region36: #{tpu_custom_call.1} parent=11 // pred_fallthru
          _
        // Predicated region
        $region37: #{tpu_custom_call.1} parent=11 // pred_check
          %p316 = pneg %p171
        $region38: #{tpu_custom_call.1} parent=11 // pred_check_branch
          %318 = sbr.rel (%p316) target = $region40
        $region39: #{tpu_custom_call.1} parent=11 // pred_region
          %s320 = ssub.s32 8192, 8192
          %321 = vsyncadd [#allocation12], %s320
          %s322 = sshll.u32 [#allocation13], 4
          %s323 = int_to_ptr.vmem [resolvable:$true] %s322
          %328 = dma.hbm_to_vmem [thread:$0]  %s6, 8192, %s323, [#allocation12], 256, 256, 16
        $region40: #{tpu_custom_call.1} parent=11 // pred_fallthru
          _
      $region12: #{tpu_custom_call.1} parent=5 // pred_fallthru
        _
      %p329 = scmp.lt.s32.totalorder %s24, 2
      // Predicated region
      $region41: #{tpu_custom_call.1} parent=5 // pred_check
        %p330 = pneg %p329
      $region42: #{tpu_custom_call.1} parent=5 // pred_check_branch
        %332 = sbr.rel (%p330) target = $region44
      $region43: #{tpu_custom_call.1} parent=5 // pred_region
        // Predicated region
        $region45: #{tpu_custom_call.1} parent=43 // pred_check
          %p333 = pneg %p191
        $region46: #{tpu_custom_call.1} parent=43 // pred_check_branch
          %335 = sbr.rel (%p333) target = $region48
        $region47: #{tpu_custom_call.1} parent=43 // pred_region
          %s336 = sand.u32 %s181, 1
          %s337 = scalar_lea.sflag [#allocation15], %s336
          %s338 = sand.u32 %s181, 1
          %s339 = smul.addr %s338, 32
          %s340 = scalar_lea.vmem [#allocation14], %s339
          %s341 = smul.u32 2, %s24
          %s343 = ssub.s32 512, 512
          %344 = vsyncadd %s337, %s343
          %s345 = smul.addr %s341, 2
          %s346 = smul.addr %s345, 128
          %s347 = scalar_lea.hbm %s7, %s346
          %s348 = sshll.u32 %s340, 4
          %s349 = int_to_ptr.vmem [resolvable:$true] %s348
          %354 = dma.hbm_to_vmem [thread:$0]  %s347, 512, %s349, %s337, 256, 256, 16
        $region48: #{tpu_custom_call.1} parent=43 // pred_fallthru
          _
      $region44: #{tpu_custom_call.1} parent=5 // pred_fallthru
        _
      %p355 = scmp.le.s32.totalorder 1, %s24
      %p356 = scmp.lt.s32.totalorder %s24, 3
      %p357 = pnand %p355, %p356
      %p358 = pneg %p357
      // Predicated region
      $region49: #{tpu_custom_call.1} parent=5 // pred_check
        _
      $region50: #{tpu_custom_call.1} parent=5 // pred_check_branch
        %360 = sbr.rel (%p357) target = $region52
      $region51: #{tpu_custom_call.1} parent=5 // pred_region
        %s361 = ssub.s32 %s24, 1
        // Predicated region
        $region53: #{tpu_custom_call.1} parent=51 // pred_check
          %p362 = pneg %p45
        $region54: #{tpu_custom_call.1} parent=51 // pred_check_branch
          %364 = sbr.rel (%p362) target = $region56
        $region55: #{tpu_custom_call.1} parent=51 // pred_region
          %365 = dma.done [#allocation3], 512
        $region56: #{tpu_custom_call.1} parent=51 // pred_fallthru
          _
        // Predicated region
        $region57: #{tpu_custom_call.1} parent=51 // pred_check
          %p366 = pneg %p66
        $region58: #{tpu_custom_call.1} parent=51 // pred_check_branch
          %368 = sbr.rel (%p366) target = $region60
        $region59: #{tpu_custom_call.1} parent=51 // pred_region
          %369 = dma.done [#allocation6], 512
        $region60: #{tpu_custom_call.1} parent=51 // pred_fallthru
          _
        // Predicated region
        $region61: #{tpu_custom_call.1} parent=51 // pred_check
          %p370 = pneg %p87
        $region62: #{tpu_custom_call.1} parent=51 // pred_check_branch
          %372 = sbr.rel (%p370) target = $region64
        $region63: #{tpu_custom_call.1} parent=51 // pred_region
          %373 = dma.done [#allocation6], 512
        $region64: #{tpu_custom_call.1} parent=51 // pred_fallthru
          _
        // Predicated region
        $region65: #{tpu_custom_call.1} parent=51 // pred_check
          %p374 = pneg %p108
        $region66: #{tpu_custom_call.1} parent=51 // pred_check_branch
          %376 = sbr.rel (%p374) target = $region68
        $region67: #{tpu_custom_call.1} parent=51 // pred_region
          %377 = dma.done [#allocation9], 512
        $region68: #{tpu_custom_call.1} parent=51 // pred_fallthru
          _
        // Predicated region
        $region69: #{tpu_custom_call.1} parent=51 // pred_check
          %p378 = pneg %p129
        $region70: #{tpu_custom_call.1} parent=51 // pred_check_branch
          %380 = sbr.rel (%p378) target = $region72
        $region71: #{tpu_custom_call.1} parent=51 // pred_region
          %381 = dma.done [#allocation9], 512
        $region72: #{tpu_custom_call.1} parent=51 // pred_fallthru
          _
        // Predicated region
        $region73: #{tpu_custom_call.1} parent=51 // pred_check
          %p382 = pneg %p150
        $region74: #{tpu_custom_call.1} parent=51 // pred_check_branch
          %384 = sbr.rel (%p382) target = $region76
        $region75: #{tpu_custom_call.1} parent=51 // pred_region
          %385 = dma.done [#allocation12], 8192
        $region76: #{tpu_custom_call.1} parent=51 // pred_fallthru
          _
        // Predicated region
        $region77: #{tpu_custom_call.1} parent=51 // pred_check
          %p386 = pneg %p171
        $region78: #{tpu_custom_call.1} parent=51 // pred_check_branch
          %388 = sbr.rel (%p386) target = $region80
        $region79: #{tpu_custom_call.1} parent=51 // pred_region
          %389 = dma.done [#allocation12], 8192
        $region80: #{tpu_custom_call.1} parent=51 // pred_fallthru
          _
        %s390 = sand.u32 %s184, 1
        %s391 = scalar_lea.sflag [#allocation15], %s390
        %s392 = sand.u32 %s184, 1
        %s393 = smul.addr %s392, 32
        %s394 = scalar_lea.vmem [#allocation14], %s393
        // Predicated region
        $region81: #{tpu_custom_call.1} parent=51 // pred_check
          %p395 = pneg %p197
        $region82: #{tpu_custom_call.1} parent=51 // pred_check_branch
          %397 = sbr.rel (%p395) target = $region84
        $region83: #{tpu_custom_call.1} parent=51 // pred_region
          %398 = dma.done %s391, 512
        $region84: #{tpu_custom_call.1} parent=51 // pred_fallthru
          _
        %p399 = pneg %p45
        %p400 = pneg %p42
        %p401 = pneg %p66
        %p402 = pneg %p63
        %p403 = pneg %p87
        %p404 = pneg %p84
        %p405 = pneg %p108
        %p406 = pneg %p105
        %p407 = pneg %p129
        %p408 = pneg %p126
        %p409 = pneg %p150
        %p410 = pneg %p147
        %p411 = pneg %p171
        %p412 = pneg %p168
        %s413 = sand.u32 %s184, 1
        %s414 = scalar_lea.sflag [#allocation15], %s413
        %s415 = sand.u32 %s184, 1
        %s416 = smul.addr %s415, 32
        %s417 = scalar_lea.vmem [#allocation14], %s416
        %p418 = pneg %p197
        %p419 = pneg %p194
        %p420 = pneg %p223
        %p421 = pneg %p220
        %s422 = sand.u32 %s210, 1
        %s423 = scalar_lea.sflag [#allocation4], %s422
        %s424 = sand.u32 %s210, 1
        %s425 = smul.addr %s424, 32
        %s426 = scalar_lea.vmem [#allocation16], %s425
        %s427 = smul.u32 2, %s29
        %s428 = smul.u32 2, %s29
        %v429 = vld [vmem:[%s394] sm:$0xff]
        %v430 = vld [vmem:[%s394 + $0x8] sm:$0xff]
        %v431 = vld [vmem:[%s394 + $0x10] sm:$0xff]
        %v432 = vld [vmem:[%s394 + $0x18] sm:$0xff]
        %v433 = vld [vmem:[#allocation2] sm:$0xff]
        %v434 = vld [vmem:[#allocation2 + $0x8] sm:$0xff]
        %v435 = vld [vmem:[#allocation2 + $0x10] sm:$0xff]
        %v436 = vld [vmem:[#allocation2 + $0x18] sm:$0xff]
        %v437 = vld [vmem:[#allocation5] sm:$0xff]
        %v438 = vld [vmem:[#allocation5 + $0x8] sm:$0xff]
        %v439 = vld [vmem:[#allocation5 + $0x10] sm:$0xff]
        %v440 = vld [vmem:[#allocation5 + $0x18] sm:$0xff]
        %v441 = vld [vmem:[#allocation7] sm:$0xff]
        %v442 = vld [vmem:[#allocation7 + $0x8] sm:$0xff]
        %v443 = vld [vmem:[#allocation7 + $0x10] sm:$0xff]
        %v444 = vld [vmem:[#allocation7 + $0x18] sm:$0xff]
        %v445 = vmul.f32 %v429, %v433
        %v446 = vmul.f32 %v431, %v435
        %v447 = vmul.f32 %v430, %v434
        %v448 = vmul.f32 %v432, %v436
        %v449 = vsub.f32 %v445, %v447
        %v450 = vsub.f32 %v446, %v448
        %v451 = vsub.f32 %v449, %v437
        %v452 = vsub.f32 %v450, %v439
        %v453 = vmul.f32 %v429, %v434
        %v454 = vmul.f32 %v431, %v436
        %v455 = vmul.f32 %v430, %v433
        %v456 = vmul.f32 %v432, %v435
        %v457 = vadd.f32 %v453, %v455
        %v458 = vadd.f32 %v454, %v456
        %v459 = vsub.f32 %v457, %v438
        %v460 = vsub.f32 %v458, %v440
        %v461 = vld [vmem:[#allocation11] sm:$0xff]
        %v462 = vld [vmem:[#allocation11 + $0x8] sm:$0xff]
        %v463 = vld [vmem:[#allocation11 + $0x10] sm:$0xff]
        %v464 = vld [vmem:[#allocation11 + $0x18] sm:$0xff]
        %v465 = vld [vmem:[#allocation11 + $0x20] sm:$0xff]
        %v466 = vld [vmem:[#allocation11 + $0x28] sm:$0xff]
        %v467 = vld [vmem:[#allocation11 + $0x30] sm:$0xff]
        %v468 = vld [vmem:[#allocation11 + $0x38] sm:$0xff]
        %v469 = vld [vmem:[#allocation11 + $0x40] sm:$0xff]
        %v470 = vld [vmem:[#allocation11 + $0x48] sm:$0xff]
        %v471 = vld [vmem:[#allocation11 + $0x50] sm:$0xff]
        %v472 = vld [vmem:[#allocation11 + $0x58] sm:$0xff]
        %v473 = vld [vmem:[#allocation11 + $0x60] sm:$0xff]
        %v474 = vld [vmem:[#allocation11 + $0x68] sm:$0xff]
        %v475 = vld [vmem:[#allocation11 + $0x70] sm:$0xff]
        %v476 = vld [vmem:[#allocation11 + $0x78] sm:$0xff]
        %v477 = vld [vmem:[#allocation11 + $0x80] sm:$0xff]
        %v478 = vld [vmem:[#allocation11 + $0x88] sm:$0xff]
        %v479 = vld [vmem:[#allocation11 + $0x90] sm:$0xff]
        %v480 = vld [vmem:[#allocation11 + $0x98] sm:$0xff]
        %v481 = vld [vmem:[#allocation11 + $0xa0] sm:$0xff]
        %v482 = vld [vmem:[#allocation11 + $0xa8] sm:$0xff]
        %v483 = vld [vmem:[#allocation11 + $0xb0] sm:$0xff]
        %v484 = vld [vmem:[#allocation11 + $0xb8] sm:$0xff]
        %v485 = vld [vmem:[#allocation11 + $0xc0] sm:$0xff]
        %v486 = vld [vmem:[#allocation11 + $0xc8] sm:$0xff]
        %v487 = vld [vmem:[#allocation11 + $0xd0] sm:$0xff]
        %v488 = vld [vmem:[#allocation11 + $0xd8] sm:$0xff]
        %v489 = vld [vmem:[#allocation11 + $0xe0] sm:$0xff]
        %v490 = vld [vmem:[#allocation11 + $0xe8] sm:$0xff]
        %v491 = vld [vmem:[#allocation11 + $0xf0] sm:$0xff]
        %v492 = vld [vmem:[#allocation11 + $0xf8] sm:$0xff]
        %v493 = vld [vmem:[#allocation11 + $0x100] sm:$0xff]
        %v494 = vld [vmem:[#allocation11 + $0x108] sm:$0xff]
        %v495 = vld [vmem:[#allocation11 + $0x110] sm:$0xff]
        %v496 = vld [vmem:[#allocation11 + $0x118] sm:$0xff]
        %v497 = vld [vmem:[#allocation11 + $0x120] sm:$0xff]
        %v498 = vld [vmem:[#allocation11 + $0x128] sm:$0xff]
        %v499 = vld [vmem:[#allocation11 + $0x130] sm:$0xff]
        %v500 = vld [vmem:[#allocation11 + $0x138] sm:$0xff]
        %v501 = vld [vmem:[#allocation11 + $0x140] sm:$0xff]
        %v502 = vld [vmem:[#allocation11 + $0x148] sm:$0xff]
        %v503 = vld [vmem:[#allocation11 + $0x150] sm:$0xff]
        %v504 = vld [vmem:[#allocation11 + $0x158] sm:$0xff]
        %v505 = vld [vmem:[#allocation11 + $0x160] sm:$0xff]
        %v506 = vld [vmem:[#allocation11 + $0x168] sm:$0xff]
        %v507 = vld [vmem:[#allocation11 + $0x170] sm:$0xff]
        %v508 = vld [vmem:[#allocation11 + $0x178] sm:$0xff]
        %v509 = vld [vmem:[#allocation11 + $0x180] sm:$0xff]
        %v510 = vld [vmem:[#allocation11 + $0x188] sm:$0xff]
        %v511 = vld [vmem:[#allocation11 + $0x190] sm:$0xff]
        %v512 = vld [vmem:[#allocation11 + $0x198] sm:$0xff]
        %v513 = vld [vmem:[#allocation11 + $0x1a0] sm:$0xff]
        %v514 = vld [vmem:[#allocation11 + $0x1a8] sm:$0xff]
        %v515 = vld [vmem:[#allocation11 + $0x1b0] sm:$0xff]
        %v516 = vld [vmem:[#allocation11 + $0x1b8] sm:$0xff]
        %v517 = vld [vmem:[#allocation11 + $0x1c0] sm:$0xff]
        %v518 = vld [vmem:[#allocation11 + $0x1c8] sm:$0xff]
        %v519 = vld [vmem:[#allocation11 + $0x1d0] sm:$0xff]
        %v520 = vld [vmem:[#allocation11 + $0x1d8] sm:$0xff]
        %v521 = vld [vmem:[#allocation11 + $0x1e0] sm:$0xff]
        %v522 = vld [vmem:[#allocation11 + $0x1e8] sm:$0xff]
        %v523 = vld [vmem:[#allocation11 + $0x1f0] sm:$0xff]
        %v524 = vld [vmem:[#allocation11 + $0x1f8] sm:$0xff]
        %525 = vmatprep.subr.mxu0 %v462
        %526 = vmatpush1.msra.mxu0 %v461
        %527 = vmatprep.subr.mxu0 %v464
        %528 = vmatpush1.msra.mxu0 %v463
        %529 = vmatprep.subr.mxu0 %v466
        %530 = vmatpush1.msra.mxu0 %v465
        %531 = vmatprep.subr.mxu0 %v468
        %532 = vmatpush1.msra.mxu0 %v467
        %533 = vmatprep.subr.mxu0 %v470
        %534 = vmatpush1.msra.mxu0 %v469
        %535 = vmatprep.subr.mxu0 %v472
        %536 = vmatpush1.msra.mxu0 %v471
        %537 = vmatprep.subr.mxu0 %v474
        %538 = vmatpush1.msra.mxu0 %v473
        %539 = vmatprep.subr.mxu0 %v476
        %540 = vmatpush1.msra.mxu0 %v475
        %541 = vmatprep.subr.mxu0 %v478
        %542 = vmatpush1.msra.mxu0 %v477
        %543 = vmatprep.subr.mxu0 %v480
        %544 = vmatpush1.msra.mxu0 %v479
        %545 = vmatprep.subr.mxu0 %v482
        %546 = vmatpush1.msra.mxu0 %v481
        %547 = vmatprep.subr.mxu0 %v484
        %548 = vmatpush1.msra.mxu0 %v483
        %549 = vmatprep.subr.mxu0 %v486
        %550 = vmatpush1.msra.mxu0 %v485
        %551 = vmatprep.subr.mxu0 %v488
        %552 = vmatpush1.msra.mxu0 %v487
        %553 = vmatprep.subr.mxu0 %v490
        %554 = vmatpush1.msra.mxu0 %v489
        %555 = vmatprep.subr.mxu0 %v492
        %556 = vmatpush1.msra.mxu0 %v491
        %557 = vmatprep.subr.mxu0 %v494
        %558 = vmatpush1.msra.mxu0 %v493
        %559 = vmatprep.subr.mxu0 %v496
        %560 = vmatpush1.msra.mxu0 %v495
        %561 = vmatprep.subr.mxu0 %v498
        %562 = vmatpush1.msra.mxu0 %v497
        %563 = vmatprep.subr.mxu0 %v500
        %564 = vmatpush1.msra.mxu0 %v499
        %565 = vmatprep.subr.mxu0 %v502
        %566 = vmatpush1.msra.mxu0 %v501
        %567 = vmatprep.subr.mxu0 %v504
        %568 = vmatpush1.msra.mxu0 %v503
        %569 = vmatprep.subr.mxu0 %v506
        %570 = vmatpush1.msra.mxu0 %v505
        %571 = vmatprep.subr.mxu0 %v508
        %572 = vmatpush1.msra.mxu0 %v507
        %573 = vmatprep.subr.mxu0 %v510
        %574 = vmatpush1.msra.mxu0 %v509
        %575 = vmatprep.subr.mxu0 %v512
        %576 = vmatpush1.msra.mxu0 %v511
        %577 = vmatprep.subr.mxu0 %v514
        %578 = vmatpush1.msra.mxu0 %v513
        %579 = vmatprep.subr.mxu0 %v516
        %580 = vmatpush1.msra.mxu0 %v515
        %581 = vmatprep.subr.mxu0 %v518
        %582 = vmatpush1.msra.mxu0 %v517
        %583 = vmatprep.subr.mxu0 %v520
        %584 = vmatpush1.msra.mxu0 %v519
        %585 = vmatprep.subr.mxu0 %v522
        %586 = vmatpush1.msra.mxu0 %v521
        %587 = vmatprep.subr.mxu0 %v524
        %588 = vmatpush1.msra.mxu0 %v523
        %589 = vmatprep.mubr.f32.mxu0 %v459
        %590 = vmatmul.mubr.f32.gmra.mrb[0].mxu0 %v451
        %v591 = vpop.f32.mrb[0].mxu0
        %v592 = vadd.f32 0.0, %v591
        %v593 = vpop.f32.mrb[0].mxu0
        %v594 = vadd.f32 0.0, %v593
        %595 = vmatprep.mubr.f32.mxu0 %v460
        %596 = vmatmul.mubr.f32.gmra.mrb[0].mxu0 %v452
        %v597 = vpop.f32.mrb[0].mxu0
        %v598 = vadd.f32 0.0, %v597
        %v599 = vpop.f32.mrb[0].mxu0
        %v600 = vadd.f32 0.0, %v599
        %601 = vdwg.mxu0
        %v602 = vld [vmem:[#allocation8] sm:$0xff]
        %v603 = vld [vmem:[#allocation8 + $0x8] sm:$0xff]
        %v604 = vld [vmem:[#allocation8 + $0x10] sm:$0xff]
        %v605 = vld [vmem:[#allocation8 + $0x18] sm:$0xff]
        %vm606 = vcmask 261120
        %v608 = vsel %vm606, %v602, 0
        %v611 = vsel %vm606, %v603, 0
        %v614 = vsel %vm606, %v604, 0
        %v617 = vsel %vm606, %v605, 0
        %619 = vmatprep.subr.mxu0 0.0
        %620 = vmatpush1.msra.mxu0 %v592
        %621 = vmatprep.subr.mxu0 0.0
        %622 = vmatpush1.msra.mxu0 %v598
        %623 = vmatprep.subr.mxu0 0.0
        %624 = vmatpush1.msra.mxu0 %v594
        %625 = vmatprep.subr.mxu0 0.0
        %626 = vmatpush1.msra.mxu0 %v600
        %627 = vmatprep.subr.mxu0 0.0
        %628 = vmatpush1.msra.mxu0 0.0
        %629 = vmatprep.subr.mxu0 0.0
        %630 = vmatpush1.msra.mxu0 0.0
        %631 = vmatprep.subr.mxu0 0.0
        %632 = vmatpush1.msra.mxu0 0.0
        %633 = vmatprep.subr.mxu0 0.0
        %634 = vmatpush1.msra.mxu0 0.0
        %635 = vmatprep.subr.mxu0 0.0
        %636 = vmatpush1.msra.mxu0 0.0
        %637 = vmatprep.subr.mxu0 0.0
        %638 = vmatpush1.msra.mxu0 0.0
        %639 = vmatprep.subr.mxu0 0.0
        %640 = vmatpush1.msra.mxu0 0.0
        %641 = vmatprep.subr.mxu0 0.0
        %642 = vmatpush1.msra.mxu0 0.0
        %643 = vmatprep.subr.mxu0 0.0
        %644 = vmatpush1.msra.mxu0 0.0
        %645 = vmatprep.subr.mxu0 0.0
        %646 = vmatpush1.msra.mxu0 0.0
        %647 = vmatprep.subr.mxu0 0.0
        %648 = vmatpush1.msra.mxu0 0.0
        %649 = vmatprep.subr.mxu0 0.0
        %650 = vmatpush1.msra.mxu0 0.0
        %651 = vmatprep.subr.mxu0 0.0
        %652 = vmatpush1.msra.mxu0 0.0
        %653 = vmatprep.subr.mxu0 0.0
        %654 = vmatpush1.msra.mxu0 0.0
        %655 = vmatprep.subr.mxu0 0.0
        %656 = vmatpush1.msra.mxu0 0.0
        %657 = vmatprep.subr.mxu0 0.0
        %658 = vmatpush1.msra.mxu0 0.0
        %659 = vmatprep.subr.mxu0 0.0
        %660 = vmatpush1.msra.mxu0 0.0
        %661 = vmatprep.subr.mxu0 0.0
        %662 = vmatpush1.msra.mxu0 0.0
        %663 = vmatprep.subr.mxu0 0.0
        %664 = vmatpush1.msra.mxu0 0.0
        %665 = vmatprep.subr.mxu0 0.0
        %666 = vmatpush1.msra.mxu0 0.0
        %667 = vmatprep.subr.mxu0 0.0
        %668 = vmatpush1.msra.mxu0 0.0
        %669 = vmatprep.subr.mxu0 0.0
        %670 = vmatpush1.msra.mxu0 0.0
        %671 = vmatprep.subr.mxu0 0.0
        %672 = vmatpush1.msra.mxu0 0.0
        %673 = vmatprep.subr.mxu0 0.0
        %674 = vmatpush1.msra.mxu0 0.0
        %675 = vmatprep.subr.mxu0 0.0
        %676 = vmatpush1.msra.mxu0 0.0
        %677 = vmatprep.subr.mxu0 0.0
        %678 = vmatpush1.msra.mxu0 0.0
        %679 = vmatprep.subr.mxu0 0.0
        %680 = vmatpush1.msra.mxu0 0.0
        %681 = vmatprep.subr.mxu0 0.0
        %682 = vmatpush1.msra.mxu0 0.0
        %683 = vmatprep.mubr.f32.mxu0 0.0
        %684 = vmatmul.mubr.f32.gmra.mrb[0].mxu0 %v608
        %v685 = vpop.f32.mrb[0].mxu0
        %v686 = vadd.f32 0.0, %v685
        %v687 = vpop.f32.mrb[0].mxu0
        %688 = vmatprep.mubr.f32.mxu0 0.0
        %689 = vmatmul.mubr.f32.gmra.mrb[0].mxu0 %v611
        %v690 = vpop.f32.mrb[0].mxu0
        %v691 = vadd.f32 0.0, %v690
        %v692 = vpop.f32.mrb[0].mxu0
        %693 = vmatprep.mubr.f32.mxu0 0.0
        %694 = vmatmul.mubr.f32.gmra.mrb[0].mxu0 %v614
        %v695 = vpop.f32.mrb[0].mxu0
        %v696 = vadd.f32 0.0, %v695
        %v697 = vpop.f32.mrb[0].mxu0
        %698 = vmatprep.mubr.f32.mxu0 0.0
        %699 = vmatmul.mubr.f32.gmra.mrb[0].mxu0 %v617
        %v700 = vpop.f32.mrb[0].mxu0
        %v701 = vadd.f32 0.0, %v700
        %v702 = vpop.f32.mrb[0].mxu0
        %703 = vdwg.mxu0
        %v704 = vmul.f32 %v686, %v441
        %v705 = vmul.f32 %v691, %v443
        %v706 = vmul.f32 %v696, %v442
        %v707 = vmul.f32 %v701, %v444
        %v708 = vsub.f32 %v704, %v706
        %v709 = vsub.f32 %v705, %v707
        %v710 = vmul.f32 %v686, %v442
        %v711 = vmul.f32 %v691, %v444
        %v712 = vmul.f32 %v696, %v441
        %v713 = vmul.f32 %v701, %v443
        %v714 = vadd.f32 %v710, %v712
        %v715 = vadd.f32 %v711, %v713
        %v716 = vld [vmem:[#allocation10] sm:$0xff]
        %v717 = vld [vmem:[#allocation10 + $0x8] sm:$0xff]
        %v718 = vld [vmem:[#allocation10 + $0x10] sm:$0xff]
        %v719 = vld [vmem:[#allocation10 + $0x18] sm:$0xff]
        %v721 = vsel %vm606, %v716, 0
        %v724 = vsel %vm606, %v717, 0
        %v727 = vsel %vm606, %v718, 0
        %v730 = vsel %vm606, %v719, 0
        %732 = vmatprep.subr.mxu0 0.0
        %733 = vmatpush1.msra.mxu0 %v708
        %734 = vmatprep.subr.mxu0 0.0
        %735 = vmatpush1.msra.mxu0 %v709
        %736 = vmatprep.subr.mxu0 0.0
        %737 = vmatpush1.msra.mxu0 %v714
        %738 = vmatprep.subr.mxu0 0.0
        %739 = vmatpush1.msra.mxu0 %v715
        %740 = vmatprep.subr.mxu0 0.0
        %741 = vmatpush1.msra.mxu0 0.0
        %742 = vmatprep.subr.mxu0 0.0
        %743 = vmatpush1.msra.mxu0 0.0
        %744 = vmatprep.subr.mxu0 0.0
        %745 = vmatpush1.msra.mxu0 0.0
        %746 = vmatprep.subr.mxu0 0.0
        %747 = vmatpush1.msra.mxu0 0.0
        %748 = vmatprep.subr.mxu0 0.0
        %749 = vmatpush1.msra.mxu0 0.0
        %750 = vmatprep.subr.mxu0 0.0
        %751 = vmatpush1.msra.mxu0 0.0
        %752 = vmatprep.subr.mxu0 0.0
        %753 = vmatpush1.msra.mxu0 0.0
        %754 = vmatprep.subr.mxu0 0.0
        %755 = vmatpush1.msra.mxu0 0.0
        %756 = vmatprep.subr.mxu0 0.0
        %757 = vmatpush1.msra.mxu0 0.0
        %758 = vmatprep.subr.mxu0 0.0
        %759 = vmatpush1.msra.mxu0 0.0
        %760 = vmatprep.subr.mxu0 0.0
        %761 = vmatpush1.msra.mxu0 0.0
        %762 = vmatprep.subr.mxu0 0.0
        %763 = vmatpush1.msra.mxu0 0.0
        %764 = vmatprep.subr.mxu0 0.0
        %765 = vmatpush1.msra.mxu0 0.0
        %766 = vmatprep.subr.mxu0 0.0
        %767 = vmatpush1.msra.mxu0 0.0
        %768 = vmatprep.subr.mxu0 0.0
        %769 = vmatpush1.msra.mxu0 0.0
        %770 = vmatprep.subr.mxu0 0.0
        %771 = vmatpush1.msra.mxu0 0.0
        %772 = vmatprep.subr.mxu0 0.0
        %773 = vmatpush1.msra.mxu0 0.0
        %774 = vmatprep.subr.mxu0 0.0
        %775 = vmatpush1.msra.mxu0 0.0
        %776 = vmatprep.subr.mxu0 0.0
        %777 = vmatpush1.msra.mxu0 0.0
        %778 = vmatprep.subr.mxu0 0.0
        %779 = vmatpush1.msra.mxu0 0.0
        %780 = vmatprep.subr.mxu0 0.0
        %781 = vmatpush1.msra.mxu0 0.0
        %782 = vmatprep.subr.mxu0 0.0
        %783 = vmatpush1.msra.mxu0 0.0
        %784 = vmatprep.subr.mxu0 0.0
        %785 = vmatpush1.msra.mxu0 0.0
        %786 = vmatprep.subr.mxu0 0.0
        %787 = vmatpush1.msra.mxu0 0.0
        %788 = vmatprep.subr.mxu0 0.0
        %789 = vmatpush1.msra.mxu0 0.0
        %790 = vmatprep.subr.mxu0 0.0
        %791 = vmatpush1.msra.mxu0 0.0
        %792 = vmatprep.subr.mxu0 0.0
        %793 = vmatpush1.msra.mxu0 0.0
        %794 = vmatprep.subr.mxu0 0.0
        %795 = vmatpush1.msra.mxu0 0.0
        %796 = vmatprep.mubr.f32.mxu0 0.0
        %797 = vmatmul.mubr.f32.gmra.mrb[0].mxu0 %v721
        %v798 = vpop.f32.mrb[0].mxu0
        %v799 = vadd.f32 0.0, %v798
        %v800 = vpop.f32.mrb[0].mxu0
        %801 = vmatprep.mubr.f32.mxu0 0.0
        %802 = vmatmul.mubr.f32.gmra.mrb[0].mxu0 %v724
        %v803 = vpop.f32.mrb[0].mxu0
        %v804 = vadd.f32 0.0, %v803
        %v805 = vpop.f32.mrb[0].mxu0
        %806 = vmatprep.mubr.f32.mxu0 0.0
        %807 = vmatmul.mubr.f32.gmra.mrb[0].mxu0 %v727
        %v808 = vpop.f32.mrb[0].mxu0
        %v809 = vadd.f32 0.0, %v808
        %v810 = vpop.f32.mrb[0].mxu0
        %811 = vmatprep.mubr.f32.mxu0 0.0
        %812 = vmatmul.mubr.f32.gmra.mrb[0].mxu0 %v730
        %v813 = vpop.f32.mrb[0].mxu0
        %v814 = vadd.f32 0.0, %v813
        %v815 = vpop.f32.mrb[0].mxu0
        %816 = vdwg.mxu0
        %v817 = vld [vmem:[#allocation13] sm:$0xff]
        %v818 = vld [vmem:[#allocation13 + $0x8] sm:$0xff]
        %v819 = vld [vmem:[#allocation13 + $0x10] sm:$0xff]
        %v820 = vld [vmem:[#allocation13 + $0x18] sm:$0xff]
        %v821 = vld [vmem:[#allocation13 + $0x20] sm:$0xff]
        %v822 = vld [vmem:[#allocation13 + $0x28] sm:$0xff]
        %v823 = vld [vmem:[#allocation13 + $0x30] sm:$0xff]
        %v824 = vld [vmem:[#allocation13 + $0x38] sm:$0xff]
        %v825 = vld [vmem:[#allocation13 + $0x40] sm:$0xff]
        %v826 = vld [vmem:[#allocation13 + $0x48] sm:$0xff]
        %v827 = vld [vmem:[#allocation13 + $0x50] sm:$0xff]
        %v828 = vld [vmem:[#allocation13 + $0x58] sm:$0xff]
        %v829 = vld [vmem:[#allocation13 + $0x60] sm:$0xff]
        %v830 = vld [vmem:[#allocation13 + $0x68] sm:$0xff]
        %v831 = vld [vmem:[#allocation13 + $0x70] sm:$0xff]
        %v832 = vld [vmem:[#allocation13 + $0x78] sm:$0xff]
        %v833 = vld [vmem:[#allocation13 + $0x80] sm:$0xff]
        %v834 = vld [vmem:[#allocation13 + $0x88] sm:$0xff]
        %v835 = vld [vmem:[#allocation13 + $0x90] sm:$0xff]
        %v836 = vld [vmem:[#allocation13 + $0x98] sm:$0xff]
        %v837 = vld [vmem:[#allocation13 + $0xa0] sm:$0xff]
        %v838 = vld [vmem:[#allocation13 + $0xa8] sm:$0xff]
        %v839 = vld [vmem:[#allocation13 + $0xb0] sm:$0xff]
        %v840 = vld [vmem:[#allocation13 + $0xb8] sm:$0xff]
        %v841 = vld [vmem:[#allocation13 + $0xc0] sm:$0xff]
        %v842 = vld [vmem:[#allocation13 + $0xc8] sm:$0xff]
        %v843 = vld [vmem:[#allocation13 + $0xd0] sm:$0xff]
        %v844 = vld [vmem:[#allocation13 + $0xd8] sm:$0xff]
        %v845 = vld [vmem:[#allocation13 + $0xe0] sm:$0xff]
        %v846 = vld [vmem:[#allocation13 + $0xe8] sm:$0xff]
        %v847 = vld [vmem:[#allocation13 + $0xf0] sm:$0xff]
        %v848 = vld [vmem:[#allocation13 + $0xf8] sm:$0xff]
        %v849 = vld [vmem:[#allocation13 + $0x100] sm:$0xff]
        %v850 = vld [vmem:[#allocation13 + $0x108] sm:$0xff]
        %v851 = vld [vmem:[#allocation13 + $0x110] sm:$0xff]
        %v852 = vld [vmem:[#allocation13 + $0x118] sm:$0xff]
        %v853 = vld [vmem:[#allocation13 + $0x120] sm:$0xff]
        %v854 = vld [vmem:[#allocation13 + $0x128] sm:$0xff]
        %v855 = vld [vmem:[#allocation13 + $0x130] sm:$0xff]
        %v856 = vld [vmem:[#allocation13 + $0x138] sm:$0xff]
        %v857 = vld [vmem:[#allocation13 + $0x140] sm:$0xff]
        %v858 = vld [vmem:[#allocation13 + $0x148] sm:$0xff]
        %v859 = vld [vmem:[#allocation13 + $0x150] sm:$0xff]
        %v860 = vld [vmem:[#allocation13 + $0x158] sm:$0xff]
        %v861 = vld [vmem:[#allocation13 + $0x160] sm:$0xff]
        %v862 = vld [vmem:[#allocation13 + $0x168] sm:$0xff]
        %v863 = vld [vmem:[#allocation13 + $0x170] sm:$0xff]
        %v864 = vld [vmem:[#allocation13 + $0x178] sm:$0xff]
        %v865 = vld [vmem:[#allocation13 + $0x180] sm:$0xff]
        %v866 = vld [vmem:[#allocation13 + $0x188] sm:$0xff]
        %v867 = vld [vmem:[#allocation13 + $0x190] sm:$0xff]
        %v868 = vld [vmem:[#allocation13 + $0x198] sm:$0xff]
        %v869 = vld [vmem:[#allocation13 + $0x1a0] sm:$0xff]
        %v870 = vld [vmem:[#allocation13 + $0x1a8] sm:$0xff]
        %v871 = vld [vmem:[#allocation13 + $0x1b0] sm:$0xff]
        %v872 = vld [vmem:[#allocation13 + $0x1b8] sm:$0xff]
        %v873 = vld [vmem:[#allocation13 + $0x1c0] sm:$0xff]
        %v874 = vld [vmem:[#allocation13 + $0x1c8] sm:$0xff]
        %v875 = vld [vmem:[#allocation13 + $0x1d0] sm:$0xff]
        %v876 = vld [vmem:[#allocation13 + $0x1d8] sm:$0xff]
        %v877 = vld [vmem:[#allocation13 + $0x1e0] sm:$0xff]
        %v878 = vld [vmem:[#allocation13 + $0x1e8] sm:$0xff]
        %v879 = vld [vmem:[#allocation13 + $0x1f0] sm:$0xff]
        %v880 = vld [vmem:[#allocation13 + $0x1f8] sm:$0xff]
        %881 = vmatprep.subr.mxu0 %v818
        %882 = vmatpush1.msra.mxu0 %v817
        %883 = vmatprep.subr.mxu0 %v820
        %884 = vmatpush1.msra.mxu0 %v819
        %885 = vmatprep.subr.mxu0 %v822
        %886 = vmatpush1.msra.mxu0 %v821
        %887 = vmatprep.subr.mxu0 %v824
        %888 = vmatpush1.msra.mxu0 %v823
        %889 = vmatprep.subr.mxu0 %v826
        %890 = vmatpush1.msra.mxu0 %v825
        %891 = vmatprep.subr.mxu0 %v828
        %892 = vmatpush1.msra.mxu0 %v827
        %893 = vmatprep.subr.mxu0 %v830
        %894 = vmatpush1.msra.mxu0 %v829
        %895 = vmatprep.subr.mxu0 %v832
        %896 = vmatpush1.msra.mxu0 %v831
        %897 = vmatprep.subr.mxu0 %v834
        %898 = vmatpush1.msra.mxu0 %v833
        %899 = vmatprep.subr.mxu0 %v836
        %900 = vmatpush1.msra.mxu0 %v835
        %901 = vmatprep.subr.mxu0 %v838
        %902 = vmatpush1.msra.mxu0 %v837
        %903 = vmatprep.subr.mxu0 %v840
        %904 = vmatpush1.msra.mxu0 %v839
        %905 = vmatprep.subr.mxu0 %v842
        %906 = vmatpush1.msra.mxu0 %v841
        %907 = vmatprep.subr.mxu0 %v844
        %908 = vmatpush1.msra.mxu0 %v843
        %909 = vmatprep.subr.mxu0 %v846
        %910 = vmatpush1.msra.mxu0 %v845
        %911 = vmatprep.subr.mxu0 %v848
        %912 = vmatpush1.msra.mxu0 %v847
        %913 = vmatprep.subr.mxu0 %v850
        %914 = vmatpush1.msra.mxu0 %v849
        %915 = vmatprep.subr.mxu0 %v852
        %916 = vmatpush1.msra.mxu0 %v851
        %917 = vmatprep.subr.mxu0 %v854
        %918 = vmatpush1.msra.mxu0 %v853
        %919 = vmatprep.subr.mxu0 %v856
        %920 = vmatpush1.msra.mxu0 %v855
        %921 = vmatprep.subr.mxu0 %v858
        %922 = vmatpush1.msra.mxu0 %v857
        %923 = vmatprep.subr.mxu0 %v860
        %924 = vmatpush1.msra.mxu0 %v859
        %925 = vmatprep.subr.mxu0 %v862
        %926 = vmatpush1.msra.mxu0 %v861
        %927 = vmatprep.subr.mxu0 %v864
        %928 = vmatpush1.msra.mxu0 %v863
        %929 = vmatprep.subr.mxu0 %v866
        %930 = vmatpush1.msra.mxu0 %v865
        %931 = vmatprep.subr.mxu0 %v868
        %932 = vmatpush1.msra.mxu0 %v867
        %933 = vmatprep.subr.mxu0 %v870
        %934 = vmatpush1.msra.mxu0 %v869
        %935 = vmatprep.subr.mxu0 %v872
        %936 = vmatpush1.msra.mxu0 %v871
        %937 = vmatprep.subr.mxu0 %v874
        %938 = vmatpush1.msra.mxu0 %v873
        %939 = vmatprep.subr.mxu0 %v876
        %940 = vmatpush1.msra.mxu0 %v875
        %941 = vmatprep.subr.mxu0 %v878
        %942 = vmatpush1.msra.mxu0 %v877
        %943 = vmatprep.subr.mxu0 %v880
        %944 = vmatpush1.msra.mxu0 %v879
        %945 = vmatprep.mubr.f32.mxu0 %v809
        %946 = vmatmul.mubr.f32.gmra.mrb[0].mxu0 %v799
        %v947 = vpop.f32.mrb[0].mxu0
        %v948 = vadd.f32 0.0, %v947
        %v949 = vpop.f32.mrb[0].mxu0
        %v950 = vadd.f32 0.0, %v949
        %951 = vmatprep.mubr.f32.mxu0 %v814
        %952 = vmatmul.mubr.f32.gmra.mrb[0].mxu0 %v804
        %v953 = vpop.f32.mrb[0].mxu0
        %v954 = vadd.f32 0.0, %v953
        %v955 = vpop.f32.mrb[0].mxu0
        %v956 = vadd.f32 0.0, %v955
        %957 = vdwg.mxu0
        %958 = vst [vmem:[%s426] sm:$0xff] %v948
        %959 = vst [vmem:[%s426 + $0x8] sm:$0xff] %v950
        %960 = vst [vmem:[%s426 + $0x10] sm:$0xff] %v954
        %961 = vst [vmem:[%s426 + $0x18] sm:$0xff] %v956
        %s962 = sand.u32 %s210, 1
        %s963 = scalar_lea.sflag [#allocation4], %s962
        %s964 = sand.u32 %s210, 1
        %s965 = smul.addr %s964, 32
        %s966 = scalar_lea.vmem [#allocation16], %s965
        // Predicated region
        $region85: #{tpu_custom_call.1} parent=51 // pred_check
          %p967 = pneg %p220
        $region86: #{tpu_custom_call.1} parent=51 // pred_check_branch
          %969 = sbr.rel (%p967) target = $region88
        $region87: #{tpu_custom_call.1} parent=51 // pred_region
          %s970 = smul.u32 2, %s29
          %s972 = ssub.s32 512, 512
          %973 = vsyncadd %s963, %s972
          %s974 = smul.addr %s970, 2
          %s975 = smul.addr %s974, 128
          %s976 = scalar_lea.hbm %s8, %s975
          %s977 = sshll.u32 %s966, 4
          %s978 = int_to_ptr.vmem [resolvable:$true] %s977
          %983 = dma.vmem_to_hbm [thread:$0]  %s978, 512, %s976, %s963, 256, 256, 16
        $region88: #{tpu_custom_call.1} parent=51 // pred_fallthru
          _
      $region52: #{tpu_custom_call.1} parent=5 // pred_fallthru
        _
      %p984 = scmp.le.s32.totalorder 2, %s24
      // Predicated region
      $region89: #{tpu_custom_call.1} parent=5 // pred_check
        %p985 = pneg %p984
      $region90: #{tpu_custom_call.1} parent=5 // pred_check_branch
        %987 = sbr.rel (%p985) target = $region92
      $region91: #{tpu_custom_call.1} parent=5 // pred_region
        %s988 = ssub.s32 %s24, 2
        // Predicated region
        $region93: #{tpu_custom_call.1} parent=91 // pred_check
          %p989 = pneg %p226
        $region94: #{tpu_custom_call.1} parent=91 // pred_check_branch
          %991 = sbr.rel (%p989) target = $region96
        $region95: #{tpu_custom_call.1} parent=91 // pred_region
          %s992 = sand.u32 %s211, 1
          %s993 = scalar_lea.sflag [#allocation4], %s992
          %s994 = sand.u32 %s211, 1
          %s995 = smul.addr %s994, 32
          %s996 = scalar_lea.vmem [#allocation16], %s995
          %997 = dma.done %s993, 512
        $region96: #{tpu_custom_call.1} parent=91 // pred_fallthru
          _
      $region92: #{tpu_custom_call.1} parent=5 // pred_fallthru
        _
    $region6: #{tpu_custom_call.1} parent=1 // loop_footer
      %s28 = sadd.s32 1, %s24
    $region7: #{tpu_custom_call.1} parent=1 // loop_footer_branch
      %23 = sbr.rel target = $region3
    $region8: #{tpu_custom_call.1} parent=1 // loop_exit
      _
    %998 = vsyncpa [#allocation3], 1
    %s999 = scalar_lea.sflag [#allocation3], 1
    %1000 = vsyncpa %s999, 1
    %1001 = vsyncpa [#allocation6], 1
    %1002 = vsyncpa [#allocation9], 1
    %1003 = vsyncpa [#allocation12], 1
    %1004 = vsyncpa [#allocation15], 1
    %s1005 = scalar_lea.sflag [#allocation15], 1
    %1006 = vsyncpa %s1005, 1
    %1007 = vsyncpa [#allocation4], 1
    %s1008 = scalar_lea.sflag [#allocation4], 1
    %1009 = vsyncpa %s1008, 1

</llo_original>
